<compile_context>
chip_gen: v6e
topology: v6e:2x2x1
jax: 0.10.0
libtpu: 0.0.40
codegen_flags: <defaults>
</compile_context>

<pallas_src>
import jax
import jax.numpy as jnp
from jax import lax
from jax.experimental import pallas as pl
from jax.experimental.pallas import tpu as pltpu

IGNORE_INDEX = 19
_LANES = 128
_SUBLANES = 8


def _multitask_loss_kernel(pv_ref, disp_ref, dgt_ref, seg1_ref, seg2_ref, tgt_ref,
                           out_d_ref, out_s1_ref, out_s2_ref):
    # pv_ref (SMEM, (6,)): [lv_disp, lv_seg1, lv_seg2,
    #                       exp(-lv_disp), exp(-lv_seg1), exp(-lv_seg2)]
    lv_d, lv_s1, lv_s2 = pv_ref[0], pv_ref[1], pv_ref[2]
    w_d, w_s1, w_s2 = pv_ref[3], pv_ref[4], pv_ref[5]

    _, num_classes, tile_rows, _ = seg1_ref.shape
    # 32-row chunks (4 vregs per op, bf16-friendly multiple of 16) when possible.
    if tile_rows % 32 == 0:
        sub = 32
    elif tile_rows % 16 == 0:
        sub = 16
    elif tile_rows % _SUBLANES == 0:
        sub = _SUBLANES
    else:
        sub = tile_rows
    nchunks = tile_rows // sub

    def _chunk(r0):
        start = r0 if isinstance(r0, int) else pl.multiple_of(r0, sub)
        rows = pl.ds(start, sub)

        # ---- disparity L1 branch: pure elementwise on a dense (sub, 128) slab ----
        d = disp_ref[0, rows, :].astype(jnp.float32)
        g = dgt_ref[0, rows, :].astype(jnp.float32)
        out_d_ref[0, rows, :] = w_d * jnp.abs(d - g) + lv_d

        # ---- per-pixel cross entropy with ignore_index=19 (reduction='none') ----
        tgt = tgt_ref[0, rows, :]                         # (sub, 128) int32
        ignore = tgt == IGNORE_INDEX

        # Pass 1: running max for BOTH heads together.  Two heads x (sub/8) vregs
        # per op -> 8 independent max chains; no XLU, no one-hot.
        # TODO(synk): for bf16 logits, stash the f32 rows in a VMEM scratch during
        # this pass to avoid the duplicate astype in pass 2.
        m1 = seg1_ref[0, 0, rows, :].astype(jnp.float32)
        m2 = seg2_ref[0, 0, rows, :].astype(jnp.float32)
        for c in range(1, num_classes):
            m1 = jnp.maximum(m1, seg1_ref[0, c, rows, :].astype(jnp.float32))
            m2 = jnp.maximum(m2, seg2_ref[0, c, rows, :].astype(jnp.float32))

        # Pass 2: sum-exp + target-logit gather; (tgt == c) computed once per class
        # and shared by both heads.
        s1 = jnp.zeros_like(m1)
        s2 = jnp.zeros_like(m2)
        tl1 = jnp.zeros_like(m1)
        tl2 = jnp.zeros_like(m2)
        for c in range(num_classes):
            eq = tgt == c
            r1 = seg1_ref[0, c, rows, :].astype(jnp.float32)
            r2 = seg2_ref[0, c, rows, :].astype(jnp.float32)
            s1 = s1 + jnp.exp(r1 - m1)
            s2 = s2 + jnp.exp(r2 - m2)
            tl1 = jnp.where(eq, r1, tl1)
            tl2 = jnp.where(eq, r2, tl2)

        # PyTorch reduction='none' yields 0 at ignored positions (loss = log_var).
        # Note: out-of-range labels != 19 silently give lse (tl stays 0) instead of
        # erroring like PyTorch.
        ce1 = jnp.where(ignore, 0.0, jnp.log(s1) + m1 - tl1)
        ce2 = jnp.where(ignore, 0.0, jnp.log(s2) + m2 - tl2)
        out_s1_ref[0, rows, :] = w_s1 * ce1 + lv_s1
        out_s2_ref[0, rows, :] = w_s2 * ce2 + lv_s2

    if nchunks == 1:
        _chunk(0)
    else:
        def body(i, carry):
            _chunk(i * sub)
            return carry
        lax.fori_loop(0, nchunks, body, 0, unroll=2)


def _round_up(x, m):
    return ((x + m - 1) // m) * m


def _vmem_params():
    """(vmem_limit_bytes, tile_row_cap) for the current TPU generation."""
    phys = 64 * 1024 * 1024
    try:
        info = pltpu.get_tpu_info()
        phys = int(getattr(info, "vmem_capacity_bytes", phys) or phys)
    except Exception:
        pass
    if phys >= 128 * 1024 * 1024:        # v5e / v6e: 128 MiB physical VMEM
        return 96 * 1024 * 1024, 1024
    return 48 * 1024 * 1024, 512         # v7x: 64 MiB per TensorCore


def _choose_tile_rows(hw_rows, num_classes, elem_bytes, vmem_limit_bytes, cap, n_images):
    """Budget-driven pixel-tile height (in 128-lane rows).

    Returns (tile_rows, hw_final): hw_final >= hw_rows is a multiple of tile_rows
    (the pixel axis is padded to hw_final when needed).
    """
    # Per lane-row VMEM bytes of one buffered tile set:
    #   disp + disp_gt (2*e) + two seg heads (2*C*e) + int32 target (4) + 3 f32 outs (12)
    per_row = _LANES * (2 * elem_bytes + 2 * num_classes * elem_bytes + 4 + 12)
    budget = int(vmem_limit_bytes * 0.7)              # headroom for compiler scratch
    max_rows = max(_SUBLANES, min(cap, budget // (2 * per_row)))   # x2: double-buffered
    max_rows = (max_rows // _SUBLANES) * _SUBLANES

    hw8 = _round_up(hw_rows, _SUBLANES)
    if hw8 <= max_rows:
        tile, hw_final = hw8, hw8
    else:
        cands = list(range(32, max_rows + 1, 32)) or \
            [t for t in (8, 16, 24) if t <= max_rows]
        best = None
        for t in cands:
            hw_f = _round_up(hw_rows, t)
            key = (hw_f, -t)                          # least padding, then biggest tile
            if best is None or key < best[0]:
                best = (key, t, hw_f)
        tile, hw_final = best[1], best[2]

    # v7x has 2 TensorCores: make sure the parallel grid has >= 2 steps.
    if n_images * (hw_final // tile) < 2 and tile % 16 == 0:
        tile //= 2
    return tile, hw_final


@jax.jit
def multitask_loss(log_vars, disp, disp_gt, seg1, seg2, seg_gt):
    """log_vars: (3,) = [log_var_disp, log_var_seg1, log_var_seg2].

    disp, disp_gt: (N, H, W); seg1, seg2: (N, C, H, W); seg_gt: (N, H, W) int.
    Returns (loss_disp, loss_seg1, loss_seg2), each (N, H, W) float32.
    """
    N, C, H, W = seg1.shape
    HW = H * W
    assert disp.shape == (N, H, W) and disp_gt.shape == (N, H, W)
    assert seg2.shape == (N, C, H, W) and seg_gt.shape == (N, H, W)
    assert HW % _LANES == 0, "H*W must be a multiple of 128"
    # TODO(synk): support H*W not a multiple of 128 (lane padding + mask).
    hw_rows = HW // _LANES

    vmem_limit, cap = _vmem_params()
    elem_bytes = jnp.dtype(seg1.dtype).itemsize
    tile_rows, hw_final = _choose_tile_rows(hw_rows, C, elem_bytes, vmem_limit, cap, N)

    # Free reshapes (native NCHW / NHW memory order preserved): lane-dense
    # (rows, 128) slabs. No transpose, no wrapper-side fp32 cast of the big tensors.
    disp_f = disp.reshape(N, hw_rows, _LANES)
    dgt_f = disp_gt.reshape(N, hw_rows, _LANES)
    seg1_f = seg1.reshape(N, C, hw_rows, _LANES)
    seg2_f = seg2.reshape(N, C, hw_rows, _LANES)
    tgt_f = seg_gt.reshape(N, hw_rows, _LANES)
    if tgt_f.dtype != jnp.int32:
        # Only materialize an extra cast pass when the label dtype is not int32.
        tgt_f = tgt_f.astype(jnp.int32)

    if hw_final > hw_rows:
        pad = hw_final - hw_rows
        disp_f = jnp.pad(disp_f, ((0, 0), (0, pad), (0, 0)))
        dgt_f = jnp.pad(dgt_f, ((0, 0), (0, pad), (0, 0)))
        seg1_f = jnp.pad(seg1_f, ((0, 0), (0, 0), (0, pad), (0, 0)))
        seg2_f = jnp.pad(seg2_f, ((0, 0), (0, 0), (0, pad), (0, 0)))
        tgt_f = jnp.pad(tgt_f, ((0, 0), (0, pad), (0, 0)),
                        constant_values=IGNORE_INDEX)

    lv = log_vars.reshape(3).astype(jnp.float32)
    pv = jnp.concatenate([lv, jnp.exp(-lv)])        # hoisted exp(-log_var) scalars

    P = N * HW
    cost = pl.CostEstimate(
        flops=int(P * (6 + 14 * C)),
        transcendentals=int(P * (2 * C + 2)),
        bytes_accessed=int(P * ((2 + 2 * C) * elem_bytes + 4 + 3 * 4)),
    )

    pix_spec = pl.BlockSpec((1, tile_rows, _LANES), lambda n, t, pv: (n, t, 0))
    seg_spec = pl.BlockSpec((1, C, tile_rows, _LANES), lambda n, t, pv: (n, 0, t, 0))
    out_sds = jax.ShapeDtypeStruct((N, hw_final, _LANES), jnp.float32)

    out_d, out_s1, out_s2 = pl.pallas_call(
        _multitask_loss_kernel,
        out_shape=(out_sds, out_sds, out_sds),
        grid_spec=pltpu.PrefetchScalarGridSpec(
            num_scalar_prefetch=1,
            grid=(N, hw_final // tile_rows),
            in_specs=[pix_spec, pix_spec, seg_spec, seg_spec, pix_spec],
            out_specs=(pix_spec, pix_spec, pix_spec),
        ),
        compiler_params=pltpu.CompilerParams(
            dimension_semantics=("parallel", "parallel"),
            vmem_limit_bytes=vmem_limit,
        ),
        cost_estimate=cost,
    )(pv, disp_f, dgt_f, seg1_f, seg2_f, tgt_f)

    if hw_final > hw_rows:
        out_d = out_d[:, :hw_rows]
        out_s1 = out_s1[:, :hw_rows]
        out_s2 = out_s2[:, :hw_rows]

    # TODO(synk): three_out=0 path (loss_seg2 = zeros(1)) is trivially handled outside
    # the kernel; only the default three_out=1 forward is implemented here.
    return (out_d.reshape(N, H, W),
            out_s1.reshape(N, H, W),
            out_s2.reshape(N, H, W))


def _reference(log_vars, disp, disp_gt, seg1, seg2, seg_gt):
    """Plain-JAX reference mirroring the PyTorch forward."""
    lv_d, lv_s1, lv_s2 = log_vars[0], log_vars[1], log_vars[2]
    l_disp = jnp.exp(-lv_d) * jnp.abs(disp - disp_gt) + lv_d

    def ce(logits, tgt):
        logp = jax.nn.log_softmax(logits.astype(jnp.float32), axis=1)   # (N, C, H, W)
        oh = jax.nn.one_hot(tgt, logits.shape[1], axis=1)               # 0-vector for ignore label
        nll = -jnp.sum(oh * logp, axis=1)
        return jnp.where(tgt == IGNORE_INDEX, 0.0, nll)

    l_seg1 = jnp.exp(-lv_s1) * ce(seg1, seg_gt) + lv_s1
    l_seg2 = jnp.exp(-lv_s2) * ce(seg2, seg_gt) + lv_s2
    return l_disp, l_seg1, l_seg2


if __name__ == "__main__":
    # Small shapes consistent with the forward: N=2 images, C=8 classes, H=64, W=128.
    # (H*W = 8192 -> 64 lane-rows per image: exercises the 2-D grid over N, the
    #  32-row sublane-chunk loop (2 chunks), while staying tiny.)
    N, C, H, W = 2, 8, 64, 128
    key = jax.random.PRNGKey(0)
    k1, k2, k3, k4, k5, k6 = jax.random.split(key, 6)

    disp = jax.random.normal(k1, (N, H, W), dtype=jnp.float32)
    disp_gt = jax.random.normal(k2, (N, H, W), dtype=jnp.float32)
    seg1 = jax.random.normal(k3, (N, C, H, W), dtype=jnp.float32)
    seg2 = jax.random.normal(k4, (N, C, H, W), dtype=jnp.float32)
    seg_gt = jax.random.randint(k5, (N, H, W), 0, C, dtype=jnp.int32)
    # Sprinkle in ignore_index pixels (value 19) to exercise the ignore path.
    ignore_mask = jax.random.bernoulli(k6, 0.2, (N, H, W))
    seg_gt = jnp.where(ignore_mask, IGNORE_INDEX, seg_gt)

    # The module's three nn.Parameter(torch.zeros(1)) scalars, packed as one (3,)
    # vector; non-zero values exercise the exp(-log_var) / +log_var paths.
    log_vars = jnp.array([0.1, -0.2, 0.3], dtype=jnp.float32)

    out = multitask_loss(log_vars, disp, disp_gt, seg1, seg2, seg_gt)
    out = jax.block_until_ready(out)

    ref = _reference(log_vars, disp, disp_gt, seg1, seg2, seg_gt)
    for o, r in zip(out, ref):
        assert o.shape == r.shape
        err = float(jnp.max(jnp.abs(o - r)))
        assert err < 1e-4, err

    print("KERNEL_OK")
</pallas_src>

<mosaic_0001>
module attributes {stable_mosaic.version = 11 : i64} {
  func.func @_multitask_loss_kernel(%arg0: i32, %arg1: i32, %arg2: memref<6xf32, #tpu.memory_space<smem>>, %arg3: memref<1x64x128xf32, #tpu.memory_space<vmem>>, %arg4: memref<1x64x128xf32, #tpu.memory_space<vmem>>, %arg5: memref<1x8x64x128xf32, #tpu.memory_space<vmem>>, %arg6: memref<1x8x64x128xf32, #tpu.memory_space<vmem>>, %arg7: memref<1x64x128xi32, #tpu.memory_space<vmem>>, %arg8: memref<1x64x128xf32, #tpu.memory_space<vmem>>, %arg9: memref<1x64x128xf32, #tpu.memory_space<vmem>>, %arg10: memref<1x64x128xf32, #tpu.memory_space<vmem>>) attributes {dimension_semantics = [#tpu.dimension_semantics<parallel>, #tpu.dimension_semantics<parallel>], iteration_bounds = array<i64: 2, 1>, scalar_prefetch = 1 : i64, scratch_operands = 0 : i64, tpu.core_type = #tpu.core_type<tc>, window_params = [{transform_indices = @transform_0, window_bounds = array<i64: 1, 64, 128>}, {transform_indices = @transform_1, window_bounds = array<i64: 1, 64, 128>}, {transform_indices = @transform_2, window_bounds = array<i64: 1, 8, 64, 128>}, {transform_indices = @transform_3, window_bounds = array<i64: 1, 8, 64, 128>}, {transform_indices = @transform_4, window_bounds = array<i64: 1, 64, 128>}, {transform_indices = @transform_5, window_bounds = array<i64: 1, 64, 128>}, {transform_indices = @transform_6, window_bounds = array<i64: 1, 64, 128>}, {transform_indices = @transform_7, window_bounds = array<i64: 1, 64, 128>}]} {
    %c0 = arith.constant 0 : index
    %0 = memref.load %arg2[%c0] : memref<6xf32, #tpu.memory_space<smem>>
    %c1 = arith.constant 1 : index
    %1 = memref.load %arg2[%c1] : memref<6xf32, #tpu.memory_space<smem>>
    %c2 = arith.constant 2 : index
    %2 = memref.load %arg2[%c2] : memref<6xf32, #tpu.memory_space<smem>>
    %c3 = arith.constant 3 : index
    %3 = memref.load %arg2[%c3] : memref<6xf32, #tpu.memory_space<smem>>
    %c4 = arith.constant 4 : index
    %4 = memref.load %arg2[%c4] : memref<6xf32, #tpu.memory_space<smem>>
    %c5 = arith.constant 5 : index
    %5 = memref.load %arg2[%c5] : memref<6xf32, #tpu.memory_space<smem>>
    %c0_i32 = arith.constant 0 : i32
    %c32_i32 = arith.constant 32 : i32
    %6 = arith.muli %c0_i32, %c32_i32 : i32
    %7 = tpu.assume_multiple %6, 32 : i32
    %c0_0 = arith.constant 0 : index
    %8 = arith.index_cast %7 : i32 to index
    %c0_1 = arith.constant 0 : index
    %9 = vector.load %arg3[%c0_0, %8, %c0_1] : memref<1x64x128xf32, #tpu.memory_space<vmem>>, vector<1x32x128xf32>
    %10 = vector.shape_cast %9 : vector<1x32x128xf32> to vector<32x128xf32>
    %c0_2 = arith.constant 0 : index
    %11 = arith.index_cast %7 : i32 to index
    %c0_3 = arith.constant 0 : index
    %12 = vector.load %arg4[%c0_2, %11, %c0_3] : memref<1x64x128xf32, #tpu.memory_space<vmem>>, vector<1x32x128xf32>
    %13 = vector.shape_cast %12 : vector<1x32x128xf32> to vector<32x128xf32>
    %14 = arith.subf %10, %13 : vector<32x128xf32>
    %15 = math.absf %14 : vector<32x128xf32>
    %16 = vector.broadcast %3 : f32 to vector<32x128xf32>
    %17 = arith.mulf %16, %15 : vector<32x128xf32>
    %18 = vector.broadcast %0 : f32 to vector<32x128xf32>
    %19 = arith.addf %17, %18 : vector<32x128xf32>
    %c0_4 = arith.constant 0 : index
    %20 = arith.index_cast %7 : i32 to index
    %c0_5 = arith.constant 0 : index
    %21 = vector.load %arg8[%c0_4, %20, %c0_5] : memref<1x64x128xf32, #tpu.memory_space<vmem>>, vector<1x32x128xf32>
    %22 = vector.shape_cast %21 : vector<1x32x128xf32> to vector<32x128xf32>
    %23 = vector.shape_cast %19 : vector<32x128xf32> to vector<1x32x128xf32>
    tpu.vector_store %arg8[%c0_4, %20, %c0_5], %23 {strides = array<i32>} : memref<1x64x128xf32, #tpu.memory_space<vmem>>, vector<1x32x128xf32>,
    %c0_6 = arith.constant 0 : index
    %24 = arith.index_cast %7 : i32 to index
    %c0_7 = arith.constant 0 : index
    %25 = vector.load %arg7[%c0_6, %24, %c0_7] : memref<1x64x128xi32, #tpu.memory_space<vmem>>, vector<1x32x128xi32>
    %26 = vector.shape_cast %25 : vector<1x32x128xi32> to vector<32x128xi32>
    %c19_i32 = arith.constant 19 : i32
    %27 = vector.broadcast %c19_i32 : i32 to vector<32x128xi32>
    %28 = arith.cmpi eq, %26, %27 : vector<32x128xi32>
    %c0_8 = arith.constant 0 : index
    %c0_9 = arith.constant 0 : index
    %29 = arith.index_cast %7 : i32 to index
    %c0_10 = arith.constant 0 : index
    %30 = vector.load %arg5[%c0_8, %c0_9, %29, %c0_10] : memref<1x8x64x128xf32, #tpu.memory_space<vmem>>, vector<1x1x32x128xf32>
    %31 = vector.shape_cast %30 : vector<1x1x32x128xf32> to vector<32x128xf32>
    %c0_11 = arith.constant 0 : index
    %c0_12 = arith.constant 0 : index
    %32 = arith.index_cast %7 : i32 to index
    %c0_13 = arith.constant 0 : index
    %33 = vector.load %arg6[%c0_11, %c0_12, %32, %c0_13] : memref<1x8x64x128xf32, #tpu.memory_space<vmem>>, vector<1x1x32x128xf32>
    %34 = vector.shape_cast %33 : vector<1x1x32x128xf32> to vector<32x128xf32>
    %c0_14 = arith.constant 0 : index
    %c1_15 = arith.constant 1 : index
    %35 = arith.index_cast %7 : i32 to index
    %c0_16 = arith.constant 0 : index
    %36 = vector.load %arg5[%c0_14, %c1_15, %35, %c0_16] : memref<1x8x64x128xf32, #tpu.memory_space<vmem>>, vector<1x1x32x128xf32>
    %37 = vector.shape_cast %36 : vector<1x1x32x128xf32> to vector<32x128xf32>
    %38 = arith.maximumf %31, %37 : vector<32x128xf32>
    %c0_17 = arith.constant 0 : index
    %c1_18 = arith.constant 1 : index
    %39 = arith.index_cast %7 : i32 to index
    %c0_19 = arith.constant 0 : index
    %40 = vector.load %arg6[%c0_17, %c1_18, %39, %c0_19] : memref<1x8x64x128xf32, #tpu.memory_space<vmem>>, vector<1x1x32x128xf32>
    %41 = vector.shape_cast %40 : vector<1x1x32x128xf32> to vector<32x128xf32>
    %42 = arith.maximumf %34, %41 : vector<32x128xf32>
    %c0_20 = arith.constant 0 : index
    %c2_21 = arith.constant 2 : index
    %43 = arith.index_cast %7 : i32 to index
    %c0_22 = arith.constant 0 : index
    %44 = vector.load %arg5[%c0_20, %c2_21, %43, %c0_22] : memref<1x8x64x128xf32, #tpu.memory_space<vmem>>, vector<1x1x32x128xf32>
    %45 = vector.shape_cast %44 : vector<1x1x32x128xf32> to vector<32x128xf32>
    %46 = arith.maximumf %38, %45 : vector<32x128xf32>
    %c0_23 = arith.constant 0 : index
    %c2_24 = arith.constant 2 : index
    %47 = arith.index_cast %7 : i32 to index
    %c0_25 = arith.constant 0 : index
    %48 = vector.load %arg6[%c0_23, %c2_24, %47, %c0_25] : memref<1x8x64x128xf32, #tpu.memory_space<vmem>>, vector<1x1x32x128xf32>
    %49 = vector.shape_cast %48 : vector<1x1x32x128xf32> to vector<32x128xf32>
    %50 = arith.maximumf %42, %49 : vector<32x128xf32>
    %c0_26 = arith.constant 0 : index
    %c3_27 = arith.constant 3 : index
    %51 = arith.index_cast %7 : i32 to index
    %c0_28 = arith.constant 0 : index
    %52 = vector.load %arg5[%c0_26, %c3_27, %51, %c0_28] : memref<1x8x64x128xf32, #tpu.memory_space<vmem>>, vector<1x1x32x128xf32>
    %53 = vector.shape_cast %52 : vector<1x1x32x128xf32> to vector<32x128xf32>
    %54 = arith.maximumf %46, %53 : vector<32x128xf32>
    %c0_29 = arith.constant 0 : index
    %c3_30 = arith.constant 3 : index
    %55 = arith.index_cast %7 : i32 to index
    %c0_31 = arith.constant 0 : index
    %56 = vector.load %arg6[%c0_29, %c3_30, %55, %c0_31] : memref<1x8x64x128xf32, #tpu.memory_space<vmem>>, vector<1x1x32x128xf32>
    %57 = vector.shape_cast %56 : vector<1x1x32x128xf32> to vector<32x128xf32>
    %58 = arith.maximumf %50, %57 : vector<32x128xf32>
    %c0_32 = arith.constant 0 : index
    %c4_33 = arith.constant 4 : index
    %59 = arith.index_cast %7 : i32 to index
    %c0_34 = arith.constant 0 : index
    %60 = vector.load %arg5[%c0_32, %c4_33, %59, %c0_34] : memref<1x8x64x128xf32, #tpu.memory_space<vmem>>, vector<1x1x32x128xf32>
    %61 = vector.shape_cast %60 : vector<1x1x32x128xf32> to vector<32x128xf32>
    %62 = arith.maximumf %54, %61 : vector<32x128xf32>
    %c0_35 = arith.constant 0 : index
    %c4_36 = arith.constant 4 : index
    %63 = arith.index_cast %7 : i32 to index
    %c0_37 = arith.constant 0 : index
    %64 = vector.load %arg6[%c0_35, %c4_36, %63, %c0_37] : memref<1x8x64x128xf32, #tpu.memory_space<vmem>>, vector<1x1x32x128xf32>
    %65 = vector.shape_cast %64 : vector<1x1x32x128xf32> to vector<32x128xf32>
    %66 = arith.maximumf %58, %65 : vector<32x128xf32>
    %c0_38 = arith.constant 0 : index
    %c5_39 = arith.constant 5 : index
    %67 = arith.index_cast %7 : i32 to index
    %c0_40 = arith.constant 0 : index
    %68 = vector.load %arg5[%c0_38, %c5_39, %67, %c0_40] : memref<1x8x64x128xf32, #tpu.memory_space<vmem>>, vector<1x1x32x128xf32>
    %69 = vector.shape_cast %68 : vector<1x1x32x128xf32> to vector<32x128xf32>
    %70 = arith.maximumf %62, %69 : vector<32x128xf32>
    %c0_41 = arith.constant 0 : index
    %c5_42 = arith.constant 5 : index
    %71 = arith.index_cast %7 : i32 to index
    %c0_43 = arith.constant 0 : index
    %72 = vector.load %arg6[%c0_41, %c5_42, %71, %c0_43] : memref<1x8x64x128xf32, #tpu.memory_space<vmem>>, vector<1x1x32x128xf32>
    %73 = vector.shape_cast %72 : vector<1x1x32x128xf32> to vector<32x128xf32>
    %74 = arith.maximumf %66, %73 : vector<32x128xf32>
    %c0_44 = arith.constant 0 : index
    %c6 = arith.constant 6 : index
    %75 = arith.index_cast %7 : i32 to index
    %c0_45 = arith.constant 0 : index
    %76 = vector.load %arg5[%c0_44, %c6, %75, %c0_45] : memref<1x8x64x128xf32, #tpu.memory_space<vmem>>, vector<1x1x32x128xf32>
    %77 = vector.shape_cast %76 : vector<1x1x32x128xf32> to vector<32x128xf32>
    %78 = arith.maximumf %70, %77 : vector<32x128xf32>
    %c0_46 = arith.constant 0 : index
    %c6_47 = arith.constant 6 : index
    %79 = arith.index_cast %7 : i32 to index
    %c0_48 = arith.constant 0 : index
    %80 = vector.load %arg6[%c0_46, %c6_47, %79, %c0_48] : memref<1x8x64x128xf32, #tpu.memory_space<vmem>>, vector<1x1x32x128xf32>
    %81 = vector.shape_cast %80 : vector<1x1x32x128xf32> to vector<32x128xf32>
    %82 = arith.maximumf %74, %81 : vector<32x128xf32>
    %c0_49 = arith.constant 0 : index
    %c7 = arith.constant 7 : index
    %83 = arith.index_cast %7 : i32 to index
    %c0_50 = arith.constant 0 : index
    %84 = vector.load %arg5[%c0_49, %c7, %83, %c0_50] : memref<1x8x64x128xf32, #tpu.memory_space<vmem>>, vector<1x1x32x128xf32>
    %85 = vector.shape_cast %84 : vector<1x1x32x128xf32> to vector<32x128xf32>
    %86 = arith.maximumf %78, %85 : vector<32x128xf32>
    %c0_51 = arith.constant 0 : index
    %c7_52 = arith.constant 7 : index
    %87 = arith.index_cast %7 : i32 to index
    %c0_53 = arith.constant 0 : index
    %88 = vector.load %arg6[%c0_51, %c7_52, %87, %c0_53] : memref<1x8x64x128xf32, #tpu.memory_space<vmem>>, vector<1x1x32x128xf32>
    %89 = vector.shape_cast %88 : vector<1x1x32x128xf32> to vector<32x128xf32>
    %90 = arith.maximumf %82, %89 : vector<32x128xf32>
    %cst = arith.constant 0.000000e+00 : f32
    %91 = vector.broadcast %cst : f32 to vector<32x128xf32>
    %cst_54 = arith.constant 0.000000e+00 : f32
    %92 = vector.broadcast %cst_54 : f32 to vector<32x128xf32>
    %cst_55 = arith.constant 0.000000e+00 : f32
    %93 = vector.broadcast %cst_55 : f32 to vector<32x128xf32>
    %cst_56 = arith.constant 0.000000e+00 : f32
    %94 = vector.broadcast %cst_56 : f32 to vector<32x128xf32>
    %c0_i32_57 = arith.constant 0 : i32
    %95 = vector.broadcast %c0_i32_57 : i32 to vector<32x128xi32>
    %96 = arith.cmpi eq, %26, %95 : vector<32x128xi32>
    %c0_58 = arith.constant 0 : index
    %c0_59 = arith.constant 0 : index
    %97 = arith.index_cast %7 : i32 to index
    %c0_60 = arith.constant 0 : index
    %98 = vector.load %arg5[%c0_58, %c0_59, %97, %c0_60] : memref<1x8x64x128xf32, #tpu.memory_space<vmem>>, vector<1x1x32x128xf32>
    %99 = vector.shape_cast %98 : vector<1x1x32x128xf32> to vector<32x128xf32>
    %c0_61 = arith.constant 0 : index
    %c0_62 = arith.constant 0 : index
    %100 = arith.index_cast %7 : i32 to index
    %c0_63 = arith.constant 0 : index
    %101 = vector.load %arg6[%c0_61, %c0_62, %100, %c0_63] : memref<1x8x64x128xf32, #tpu.memory_space<vmem>>, vector<1x1x32x128xf32>
    %102 = vector.shape_cast %101 : vector<1x1x32x128xf32> to vector<32x128xf32>
    %103 = arith.subf %99, %86 : vector<32x128xf32>
    %104 = math.exp %103 : vector<32x128xf32>
    %105 = arith.addf %91, %104 : vector<32x128xf32>
    %106 = arith.subf %102, %90 : vector<32x128xf32>
    %107 = math.exp %106 : vector<32x128xf32>
    %108 = arith.addf %92, %107 : vector<32x128xf32>
    %109 = arith.select %96, %99, %93 : vector<32x128xi1>, vector<32x128xf32>
    %110 = arith.select %96, %102, %94 : vector<32x128xi1>, vector<32x128xf32>
    %c1_i32 = arith.constant 1 : i32
    %111 = vector.broadcast %c1_i32 : i32 to vector<32x128xi32>
    %112 = arith.cmpi eq, %26, %111 : vector<32x128xi32>
    %c0_64 = arith.constant 0 : index
    %c1_65 = arith.constant 1 : index
    %113 = arith.index_cast %7 : i32 to index
    %c0_66 = arith.constant 0 : index
    %114 = vector.load %arg5[%c0_64, %c1_65, %113, %c0_66] : memref<1x8x64x128xf32, #tpu.memory_space<vmem>>, vector<1x1x32x128xf32>
    %115 = vector.shape_cast %114 : vector<1x1x32x128xf32> to vector<32x128xf32>
    %c0_67 = arith.constant 0 : index
    %c1_68 = arith.constant 1 : index
    %116 = arith.index_cast %7 : i32 to index
    %c0_69 = arith.constant 0 : index
    %117 = vector.load %arg6[%c0_67, %c1_68, %116, %c0_69] : memref<1x8x64x128xf32, #tpu.memory_space<vmem>>, vector<1x1x32x128xf32>
    %118 = vector.shape_cast %117 : vector<1x1x32x128xf32> to vector<32x128xf32>
    %119 = arith.subf %115, %86 : vector<32x128xf32>
    %120 = math.exp %119 : vector<32x128xf32>
    %121 = arith.addf %105, %120 : vector<32x128xf32>
    %122 = arith.subf %118, %90 : vector<32x128xf32>
    %123 = math.exp %122 : vector<32x128xf32>
    %124 = arith.addf %108, %123 : vector<32x128xf32>
    %125 = arith.select %112, %115, %109 : vector<32x128xi1>, vector<32x128xf32>
    %126 = arith.select %112, %118, %110 : vector<32x128xi1>, vector<32x128xf32>
    %c2_i32 = arith.constant 2 : i32
    %127 = vector.broadcast %c2_i32 : i32 to vector<32x128xi32>
    %128 = arith.cmpi eq, %26, %127 : vector<32x128xi32>
    %c0_70 = arith.constant 0 : index
    %c2_71 = arith.constant 2 : index
    %129 = arith.index_cast %7 : i32 to index
    %c0_72 = arith.constant 0 : index
    %130 = vector.load %arg5[%c0_70, %c2_71, %129, %c0_72] : memref<1x8x64x128xf32, #tpu.memory_space<vmem>>, vector<1x1x32x128xf32>
    %131 = vector.shape_cast %130 : vector<1x1x32x128xf32> to vector<32x128xf32>
    %c0_73 = arith.constant 0 : index
    %c2_74 = arith.constant 2 : index
    %132 = arith.index_cast %7 : i32 to index
    %c0_75 = arith.constant 0 : index
    %133 = vector.load %arg6[%c0_73, %c2_74, %132, %c0_75] : memref<1x8x64x128xf32, #tpu.memory_space<vmem>>, vector<1x1x32x128xf32>
    %134 = vector.shape_cast %133 : vector<1x1x32x128xf32> to vector<32x128xf32>
    %135 = arith.subf %131, %86 : vector<32x128xf32>
    %136 = math.exp %135 : vector<32x128xf32>
    %137 = arith.addf %121, %136 : vector<32x128xf32>
    %138 = arith.subf %134, %90 : vector<32x128xf32>
    %139 = math.exp %138 : vector<32x128xf32>
    %140 = arith.addf %124, %139 : vector<32x128xf32>
    %141 = arith.select %128, %131, %125 : vector<32x128xi1>, vector<32x128xf32>
    %142 = arith.select %128, %134, %126 : vector<32x128xi1>, vector<32x128xf32>
    %c3_i32 = arith.constant 3 : i32
    %143 = vector.broadcast %c3_i32 : i32 to vector<32x128xi32>
    %144 = arith.cmpi eq, %26, %143 : vector<32x128xi32>
    %c0_76 = arith.constant 0 : index
    %c3_77 = arith.constant 3 : index
    %145 = arith.index_cast %7 : i32 to index
    %c0_78 = arith.constant 0 : index
    %146 = vector.load %arg5[%c0_76, %c3_77, %145, %c0_78] : memref<1x8x64x128xf32, #tpu.memory_space<vmem>>, vector<1x1x32x128xf32>
    %147 = vector.shape_cast %146 : vector<1x1x32x128xf32> to vector<32x128xf32>
    %c0_79 = arith.constant 0 : index
    %c3_80 = arith.constant 3 : index
    %148 = arith.index_cast %7 : i32 to index
    %c0_81 = arith.constant 0 : index
    %149 = vector.load %arg6[%c0_79, %c3_80, %148, %c0_81] : memref<1x8x64x128xf32, #tpu.memory_space<vmem>>, vector<1x1x32x128xf32>
    %150 = vector.shape_cast %149 : vector<1x1x32x128xf32> to vector<32x128xf32>
    %151 = arith.subf %147, %86 : vector<32x128xf32>
    %152 = math.exp %151 : vector<32x128xf32>
    %153 = arith.addf %137, %152 : vector<32x128xf32>
    %154 = arith.subf %150, %90 : vector<32x128xf32>
    %155 = math.exp %154 : vector<32x128xf32>
    %156 = arith.addf %140, %155 : vector<32x128xf32>
    %157 = arith.select %144, %147, %141 : vector<32x128xi1>, vector<32x128xf32>
    %158 = arith.select %144, %150, %142 : vector<32x128xi1>, vector<32x128xf32>
    %c4_i32 = arith.constant 4 : i32
    %159 = vector.broadcast %c4_i32 : i32 to vector<32x128xi32>
    %160 = arith.cmpi eq, %26, %159 : vector<32x128xi32>
    %c0_82 = arith.constant 0 : index
    %c4_83 = arith.constant 4 : index
    %161 = arith.index_cast %7 : i32 to index
    %c0_84 = arith.constant 0 : index
    %162 = vector.load %arg5[%c0_82, %c4_83, %161, %c0_84] : memref<1x8x64x128xf32, #tpu.memory_space<vmem>>, vector<1x1x32x128xf32>
    %163 = vector.shape_cast %162 : vector<1x1x32x128xf32> to vector<32x128xf32>
    %c0_85 = arith.constant 0 : index
    %c4_86 = arith.constant 4 : index
    %164 = arith.index_cast %7 : i32 to index
    %c0_87 = arith.constant 0 : index
    %165 = vector.load %arg6[%c0_85, %c4_86, %164, %c0_87] : memref<1x8x64x128xf32, #tpu.memory_space<vmem>>, vector<1x1x32x128xf32>
    %166 = vector.shape_cast %165 : vector<1x1x32x128xf32> to vector<32x128xf32>
    %167 = arith.subf %163, %86 : vector<32x128xf32>
    %168 = math.exp %167 : vector<32x128xf32>
    %169 = arith.addf %153, %168 : vector<32x128xf32>
    %170 = arith.subf %166, %90 : vector<32x128xf32>
    %171 = math.exp %170 : vector<32x128xf32>
    %172 = arith.addf %156, %171 : vector<32x128xf32>
    %173 = arith.select %160, %163, %157 : vector<32x128xi1>, vector<32x128xf32>
    %174 = arith.select %160, %166, %158 : vector<32x128xi1>, vector<32x128xf32>
    %c5_i32 = arith.constant 5 : i32
    %175 = vector.broadcast %c5_i32 : i32 to vector<32x128xi32>
    %176 = arith.cmpi eq, %26, %175 : vector<32x128xi32>
    %c0_88 = arith.constant 0 : index
    %c5_89 = arith.constant 5 : index
    %177 = arith.index_cast %7 : i32 to index
    %c0_90 = arith.constant 0 : index
    %178 = vector.load %arg5[%c0_88, %c5_89, %177, %c0_90] : memref<1x8x64x128xf32, #tpu.memory_space<vmem>>, vector<1x1x32x128xf32>
    %179 = vector.shape_cast %178 : vector<1x1x32x128xf32> to vector<32x128xf32>
    %c0_91 = arith.constant 0 : index
    %c5_92 = arith.constant 5 : index
    %180 = arith.index_cast %7 : i32 to index
    %c0_93 = arith.constant 0 : index
    %181 = vector.load %arg6[%c0_91, %c5_92, %180, %c0_93] : memref<1x8x64x128xf32, #tpu.memory_space<vmem>>, vector<1x1x32x128xf32>
    %182 = vector.shape_cast %181 : vector<1x1x32x128xf32> to vector<32x128xf32>
    %183 = arith.subf %179, %86 : vector<32x128xf32>
    %184 = math.exp %183 : vector<32x128xf32>
    %185 = arith.addf %169, %184 : vector<32x128xf32>
    %186 = arith.subf %182, %90 : vector<32x128xf32>
    %187 = math.exp %186 : vector<32x128xf32>
    %188 = arith.addf %172, %187 : vector<32x128xf32>
    %189 = arith.select %176, %179, %173 : vector<32x128xi1>, vector<32x128xf32>
    %190 = arith.select %176, %182, %174 : vector<32x128xi1>, vector<32x128xf32>
    %c6_i32 = arith.constant 6 : i32
    %191 = vector.broadcast %c6_i32 : i32 to vector<32x128xi32>
    %192 = arith.cmpi eq, %26, %191 : vector<32x128xi32>
    %c0_94 = arith.constant 0 : index
    %c6_95 = arith.constant 6 : index
    %193 = arith.index_cast %7 : i32 to index
    %c0_96 = arith.constant 0 : index
    %194 = vector.load %arg5[%c0_94, %c6_95, %193, %c0_96] : memref<1x8x64x128xf32, #tpu.memory_space<vmem>>, vector<1x1x32x128xf32>
    %195 = vector.shape_cast %194 : vector<1x1x32x128xf32> to vector<32x128xf32>
    %c0_97 = arith.constant 0 : index
    %c6_98 = arith.constant 6 : index
    %196 = arith.index_cast %7 : i32 to index
    %c0_99 = arith.constant 0 : index
    %197 = vector.load %arg6[%c0_97, %c6_98, %196, %c0_99] : memref<1x8x64x128xf32, #tpu.memory_space<vmem>>, vector<1x1x32x128xf32>
    %198 = vector.shape_cast %197 : vector<1x1x32x128xf32> to vector<32x128xf32>
    %199 = arith.subf %195, %86 : vector<32x128xf32>
    %200 = math.exp %199 : vector<32x128xf32>
    %201 = arith.addf %185, %200 : vector<32x128xf32>
    %202 = arith.subf %198, %90 : vector<32x128xf32>
    %203 = math.exp %202 : vector<32x128xf32>
    %204 = arith.addf %188, %203 : vector<32x128xf32>
    %205 = arith.select %192, %195, %189 : vector<32x128xi1>, vector<32x128xf32>
    %206 = arith.select %192, %198, %190 : vector<32x128xi1>, vector<32x128xf32>
    %c7_i32 = arith.constant 7 : i32
    %207 = vector.broadcast %c7_i32 : i32 to vector<32x128xi32>
    %208 = arith.cmpi eq, %26, %207 : vector<32x128xi32>
    %c0_100 = arith.constant 0 : index
    %c7_101 = arith.constant 7 : index
    %209 = arith.index_cast %7 : i32 to index
    %c0_102 = arith.constant 0 : index
    %210 = vector.load %arg5[%c0_100, %c7_101, %209, %c0_102] : memref<1x8x64x128xf32, #tpu.memory_space<vmem>>, vector<1x1x32x128xf32>
    %211 = vector.shape_cast %210 : vector<1x1x32x128xf32> to vector<32x128xf32>
    %c0_103 = arith.constant 0 : index
    %c7_104 = arith.constant 7 : index
    %212 = arith.index_cast %7 : i32 to index
    %c0_105 = arith.constant 0 : index
    %213 = vector.load %arg6[%c0_103, %c7_104, %212, %c0_105] : memref<1x8x64x128xf32, #tpu.memory_space<vmem>>, vector<1x1x32x128xf32>
    %214 = vector.shape_cast %213 : vector<1x1x32x128xf32> to vector<32x128xf32>
    %215 = arith.subf %211, %86 : vector<32x128xf32>
    %216 = math.exp %215 : vector<32x128xf32>
    %217 = arith.addf %201, %216 : vector<32x128xf32>
    %218 = arith.subf %214, %90 : vector<32x128xf32>
    %219 = math.exp %218 : vector<32x128xf32>
    %220 = arith.addf %204, %219 : vector<32x128xf32>
    %221 = arith.select %208, %211, %205 : vector<32x128xi1>, vector<32x128xf32>
    %222 = arith.select %208, %214, %206 : vector<32x128xi1>, vector<32x128xf32>
    %223 = math.log %217 : vector<32x128xf32>
    %224 = arith.addf %223, %86 : vector<32x128xf32>
    %225 = arith.subf %224, %221 : vector<32x128xf32>
    %cst_106 = arith.constant 0.000000e+00 : f32
    %226 = vector.broadcast %cst_106 : f32 to vector<32x128xf32>
    %227 = arith.select %28, %226, %225 : vector<32x128xi1>, vector<32x128xf32>
    %228 = math.log %220 : vector<32x128xf32>
    %229 = arith.addf %228, %90 : vector<32x128xf32>
    %230 = arith.subf %229, %222 : vector<32x128xf32>
    %cst_107 = arith.constant 0.000000e+00 : f32
    %231 = vector.broadcast %cst_107 : f32 to vector<32x128xf32>
    %232 = arith.select %28, %231, %230 : vector<32x128xi1>, vector<32x128xf32>
    %233 = vector.broadcast %4 : f32 to vector<32x128xf32>
    %234 = arith.mulf %233, %227 : vector<32x128xf32>
    %235 = vector.broadcast %1 : f32 to vector<32x128xf32>
    %236 = arith.addf %234, %235 : vector<32x128xf32>
    %c0_108 = arith.constant 0 : index
    %237 = arith.index_cast %7 : i32 to index
    %c0_109 = arith.constant 0 : index
    %238 = vector.load %arg9[%c0_108, %237, %c0_109] : memref<1x64x128xf32, #tpu.memory_space<vmem>>, vector<1x32x128xf32>
    %239 = vector.shape_cast %238 : vector<1x32x128xf32> to vector<32x128xf32>
    %240 = vector.shape_cast %236 : vector<32x128xf32> to vector<1x32x128xf32>
    tpu.vector_store %arg9[%c0_108, %237, %c0_109], %240 {strides = array<i32>} : memref<1x64x128xf32, #tpu.memory_space<vmem>>, vector<1x32x128xf32>,
    %241 = vector.broadcast %5 : f32 to vector<32x128xf32>
    %242 = arith.mulf %241, %232 : vector<32x128xf32>
    %243 = vector.broadcast %2 : f32 to vector<32x128xf32>
    %244 = arith.addf %242, %243 : vector<32x128xf32>
    %c0_110 = arith.constant 0 : index
    %245 = arith.index_cast %7 : i32 to index
    %c0_111 = arith.constant 0 : index
    %246 = vector.load %arg10[%c0_110, %245, %c0_111] : memref<1x64x128xf32, #tpu.memory_space<vmem>>, vector<1x32x128xf32>
    %247 = vector.shape_cast %246 : vector<1x32x128xf32> to vector<32x128xf32>
    %248 = vector.shape_cast %244 : vector<32x128xf32> to vector<1x32x128xf32>
    tpu.vector_store %arg10[%c0_110, %245, %c0_111], %248 {strides = array<i32>} : memref<1x64x128xf32, #tpu.memory_space<vmem>>, vector<1x32x128xf32>,
    %c1_i32_112 = arith.constant 1 : i32
    %c32_i32_113 = arith.constant 32 : i32
    %249 = arith.muli %c1_i32_112, %c32_i32_113 : i32
    %250 = tpu.assume_multiple %249, 32 : i32
    %c0_114 = arith.constant 0 : index
    %251 = arith.index_cast %250 : i32 to index
    %c0_115 = arith.constant 0 : index
    %252 = vector.load %arg3[%c0_114, %251, %c0_115] : memref<1x64x128xf32, #tpu.memory_space<vmem>>, vector<1x32x128xf32>
    %253 = vector.shape_cast %252 : vector<1x32x128xf32> to vector<32x128xf32>
    %c0_116 = arith.constant 0 : index
    %254 = arith.index_cast %250 : i32 to index
    %c0_117 = arith.constant 0 : index
    %255 = vector.load %arg4[%c0_116, %254, %c0_117] : memref<1x64x128xf32, #tpu.memory_space<vmem>>, vector<1x32x128xf32>
    %256 = vector.shape_cast %255 : vector<1x32x128xf32> to vector<32x128xf32>
    %257 = arith.subf %253, %256 : vector<32x128xf32>
    %258 = math.absf %257 : vector<32x128xf32>
    %259 = vector.broadcast %3 : f32 to vector<32x128xf32>
    %260 = arith.mulf %259, %258 : vector<32x128xf32>
    %261 = vector.broadcast %0 : f32 to vector<32x128xf32>
    %262 = arith.addf %260, %261 : vector<32x128xf32>
    %c0_118 = arith.constant 0 : index
    %263 = arith.index_cast %250 : i32 to index
    %c0_119 = arith.constant 0 : index
    %264 = vector.load %arg8[%c0_118, %263, %c0_119] : memref<1x64x128xf32, #tpu.memory_space<vmem>>, vector<1x32x128xf32>
    %265 = vector.shape_cast %264 : vector<1x32x128xf32> to vector<32x128xf32>
    %266 = vector.shape_cast %262 : vector<32x128xf32> to vector<1x32x128xf32>
    tpu.vector_store %arg8[%c0_118, %263, %c0_119], %266 {strides = array<i32>} : memref<1x64x128xf32, #tpu.memory_space<vmem>>, vector<1x32x128xf32>,
    %c0_120 = arith.constant 0 : index
    %267 = arith.index_cast %250 : i32 to index
    %c0_121 = arith.constant 0 : index
    %268 = vector.load %arg7[%c0_120, %267, %c0_121] : memref<1x64x128xi32, #tpu.memory_space<vmem>>, vector<1x32x128xi32>
    %269 = vector.shape_cast %268 : vector<1x32x128xi32> to vector<32x128xi32>
    %c19_i32_122 = arith.constant 19 : i32
    %270 = vector.broadcast %c19_i32_122 : i32 to vector<32x128xi32>
    %271 = arith.cmpi eq, %269, %270 : vector<32x128xi32>
    %c0_123 = arith.constant 0 : index
    %c0_124 = arith.constant 0 : index
    %272 = arith.index_cast %250 : i32 to index
    %c0_125 = arith.constant 0 : index
    %273 = vector.load %arg5[%c0_123, %c0_124, %272, %c0_125] : memref<1x8x64x128xf32, #tpu.memory_space<vmem>>, vector<1x1x32x128xf32>
    %274 = vector.shape_cast %273 : vector<1x1x32x128xf32> to vector<32x128xf32>
    %c0_126 = arith.constant 0 : index
    %c0_127 = arith.constant 0 : index
    %275 = arith.index_cast %250 : i32 to index
    %c0_128 = arith.constant 0 : index
    %276 = vector.load %arg6[%c0_126, %c0_127, %275, %c0_128] : memref<1x8x64x128xf32, #tpu.memory_space<vmem>>, vector<1x1x32x128xf32>
    %277 = vector.shape_cast %276 : vector<1x1x32x128xf32> to vector<32x128xf32>
    %c0_129 = arith.constant 0 : index
    %c1_130 = arith.constant 1 : index
    %278 = arith.index_cast %250 : i32 to index
    %c0_131 = arith.constant 0 : index
    %279 = vector.load %arg5[%c0_129, %c1_130, %278, %c0_131] : memref<1x8x64x128xf32, #tpu.memory_space<vmem>>, vector<1x1x32x128xf32>
    %280 = vector.shape_cast %279 : vector<1x1x32x128xf32> to vector<32x128xf32>
    %281 = arith.maximumf %274, %280 : vector<32x128xf32>
    %c0_132 = arith.constant 0 : index
    %c1_133 = arith.constant 1 : index
    %282 = arith.index_cast %250 : i32 to index
    %c0_134 = arith.constant 0 : index
    %283 = vector.load %arg6[%c0_132, %c1_133, %282, %c0_134] : memref<1x8x64x128xf32, #tpu.memory_space<vmem>>, vector<1x1x32x128xf32>
    %284 = vector.shape_cast %283 : vector<1x1x32x128xf32> to vector<32x128xf32>
    %285 = arith.maximumf %277, %284 : vector<32x128xf32>
    %c0_135 = arith.constant 0 : index
    %c2_136 = arith.constant 2 : index
    %286 = arith.index_cast %250 : i32 to index
    %c0_137 = arith.constant 0 : index
    %287 = vector.load %arg5[%c0_135, %c2_136, %286, %c0_137] : memref<1x8x64x128xf32, #tpu.memory_space<vmem>>, vector<1x1x32x128xf32>
    %288 = vector.shape_cast %287 : vector<1x1x32x128xf32> to vector<32x128xf32>
    %289 = arith.maximumf %281, %288 : vector<32x128xf32>
    %c0_138 = arith.constant 0 : index
    %c2_139 = arith.constant 2 : index
    %290 = arith.index_cast %250 : i32 to index
    %c0_140 = arith.constant 0 : index
    %291 = vector.load %arg6[%c0_138, %c2_139, %290, %c0_140] : memref<1x8x64x128xf32, #tpu.memory_space<vmem>>, vector<1x1x32x128xf32>
    %292 = vector.shape_cast %291 : vector<1x1x32x128xf32> to vector<32x128xf32>
    %293 = arith.maximumf %285, %292 : vector<32x128xf32>
    %c0_141 = arith.constant 0 : index
    %c3_142 = arith.constant 3 : index
    %294 = arith.index_cast %250 : i32 to index
    %c0_143 = arith.constant 0 : index
    %295 = vector.load %arg5[%c0_141, %c3_142, %294, %c0_143] : memref<1x8x64x128xf32, #tpu.memory_space<vmem>>, vector<1x1x32x128xf32>
    %296 = vector.shape_cast %295 : vector<1x1x32x128xf32> to vector<32x128xf32>
    %297 = arith.maximumf %289, %296 : vector<32x128xf32>
    %c0_144 = arith.constant 0 : index
    %c3_145 = arith.constant 3 : index
    %298 = arith.index_cast %250 : i32 to index
    %c0_146 = arith.constant 0 : index
    %299 = vector.load %arg6[%c0_144, %c3_145, %298, %c0_146] : memref<1x8x64x128xf32, #tpu.memory_space<vmem>>, vector<1x1x32x128xf32>
    %300 = vector.shape_cast %299 : vector<1x1x32x128xf32> to vector<32x128xf32>
    %301 = arith.maximumf %293, %300 : vector<32x128xf32>
    %c0_147 = arith.constant 0 : index
    %c4_148 = arith.constant 4 : index
    %302 = arith.index_cast %250 : i32 to index
    %c0_149 = arith.constant 0 : index
    %303 = vector.load %arg5[%c0_147, %c4_148, %302, %c0_149] : memref<1x8x64x128xf32, #tpu.memory_space<vmem>>, vector<1x1x32x128xf32>
    %304 = vector.shape_cast %303 : vector<1x1x32x128xf32> to vector<32x128xf32>
    %305 = arith.maximumf %297, %304 : vector<32x128xf32>
    %c0_150 = arith.constant 0 : index
    %c4_151 = arith.constant 4 : index
    %306 = arith.index_cast %250 : i32 to index
    %c0_152 = arith.constant 0 : index
    %307 = vector.load %arg6[%c0_150, %c4_151, %306, %c0_152] : memref<1x8x64x128xf32, #tpu.memory_space<vmem>>, vector<1x1x32x128xf32>
    %308 = vector.shape_cast %307 : vector<1x1x32x128xf32> to vector<32x128xf32>
    %309 = arith.maximumf %301, %308 : vector<32x128xf32>
    %c0_153 = arith.constant 0 : index
    %c5_154 = arith.constant 5 : index
    %310 = arith.index_cast %250 : i32 to index
    %c0_155 = arith.constant 0 : index
    %311 = vector.load %arg5[%c0_153, %c5_154, %310, %c0_155] : memref<1x8x64x128xf32, #tpu.memory_space<vmem>>, vector<1x1x32x128xf32>
    %312 = vector.shape_cast %311 : vector<1x1x32x128xf32> to vector<32x128xf32>
    %313 = arith.maximumf %305, %312 : vector<32x128xf32>
    %c0_156 = arith.constant 0 : index
    %c5_157 = arith.constant 5 : index
    %314 = arith.index_cast %250 : i32 to index
    %c0_158 = arith.constant 0 : index
    %315 = vector.load %arg6[%c0_156, %c5_157, %314, %c0_158] : memref<1x8x64x128xf32, #tpu.memory_space<vmem>>, vector<1x1x32x128xf32>
    %316 = vector.shape_cast %315 : vector<1x1x32x128xf32> to vector<32x128xf32>
    %317 = arith.maximumf %309, %316 : vector<32x128xf32>
    %c0_159 = arith.constant 0 : index
    %c6_160 = arith.constant 6 : index
    %318 = arith.index_cast %250 : i32 to index
    %c0_161 = arith.constant 0 : index
    %319 = vector.load %arg5[%c0_159, %c6_160, %318, %c0_161] : memref<1x8x64x128xf32, #tpu.memory_space<vmem>>, vector<1x1x32x128xf32>
    %320 = vector.shape_cast %319 : vector<1x1x32x128xf32> to vector<32x128xf32>
    %321 = arith.maximumf %313, %320 : vector<32x128xf32>
    %c0_162 = arith.constant 0 : index
    %c6_163 = arith.constant 6 : index
    %322 = arith.index_cast %250 : i32 to index
    %c0_164 = arith.constant 0 : index
    %323 = vector.load %arg6[%c0_162, %c6_163, %322, %c0_164] : memref<1x8x64x128xf32, #tpu.memory_space<vmem>>, vector<1x1x32x128xf32>
    %324 = vector.shape_cast %323 : vector<1x1x32x128xf32> to vector<32x128xf32>
    %325 = arith.maximumf %317, %324 : vector<32x128xf32>
    %c0_165 = arith.constant 0 : index
    %c7_166 = arith.constant 7 : index
    %326 = arith.index_cast %250 : i32 to index
    %c0_167 = arith.constant 0 : index
    %327 = vector.load %arg5[%c0_165, %c7_166, %326, %c0_167] : memref<1x8x64x128xf32, #tpu.memory_space<vmem>>, vector<1x1x32x128xf32>
    %328 = vector.shape_cast %327 : vector<1x1x32x128xf32> to vector<32x128xf32>
    %329 = arith.maximumf %321, %328 : vector<32x128xf32>
    %c0_168 = arith.constant 0 : index
    %c7_169 = arith.constant 7 : index
    %330 = arith.index_cast %250 : i32 to index
    %c0_170 = arith.constant 0 : index
    %331 = vector.load %arg6[%c0_168, %c7_169, %330, %c0_170] : memref<1x8x64x128xf32, #tpu.memory_space<vmem>>, vector<1x1x32x128xf32>
    %332 = vector.shape_cast %331 : vector<1x1x32x128xf32> to vector<32x128xf32>
    %333 = arith.maximumf %325, %332 : vector<32x128xf32>
    %cst_171 = arith.constant 0.000000e+00 : f32
    %334 = vector.broadcast %cst_171 : f32 to vector<32x128xf32>
    %cst_172 = arith.constant 0.000000e+00 : f32
    %335 = vector.broadcast %cst_172 : f32 to vector<32x128xf32>
    %cst_173 = arith.constant 0.000000e+00 : f32
    %336 = vector.broadcast %cst_173 : f32 to vector<32x128xf32>
    %cst_174 = arith.constant 0.000000e+00 : f32
    %337 = vector.broadcast %cst_174 : f32 to vector<32x128xf32>
    %c0_i32_175 = arith.constant 0 : i32
    %338 = vector.broadcast %c0_i32_175 : i32 to vector<32x128xi32>
    %339 = arith.cmpi eq, %269, %338 : vector<32x128xi32>
    %c0_176 = arith.constant 0 : index
    %c0_177 = arith.constant 0 : index
    %340 = arith.index_cast %250 : i32 to index
    %c0_178 = arith.constant 0 : index
    %341 = vector.load %arg5[%c0_176, %c0_177, %340, %c0_178] : memref<1x8x64x128xf32, #tpu.memory_space<vmem>>, vector<1x1x32x128xf32>
    %342 = vector.shape_cast %341 : vector<1x1x32x128xf32> to vector<32x128xf32>
    %c0_179 = arith.constant 0 : index
    %c0_180 = arith.constant 0 : index
    %343 = arith.index_cast %250 : i32 to index
    %c0_181 = arith.constant 0 : index
    %344 = vector.load %arg6[%c0_179, %c0_180, %343, %c0_181] : memref<1x8x64x128xf32, #tpu.memory_space<vmem>>, vector<1x1x32x128xf32>
    %345 = vector.shape_cast %344 : vector<1x1x32x128xf32> to vector<32x128xf32>
    %346 = arith.subf %342, %329 : vector<32x128xf32>
    %347 = math.exp %346 : vector<32x128xf32>
    %348 = arith.addf %334, %347 : vector<32x128xf32>
    %349 = arith.subf %345, %333 : vector<32x128xf32>
    %350 = math.exp %349 : vector<32x128xf32>
    %351 = arith.addf %335, %350 : vector<32x128xf32>
    %352 = arith.select %339, %342, %336 : vector<32x128xi1>, vector<32x128xf32>
    %353 = arith.select %339, %345, %337 : vector<32x128xi1>, vector<32x128xf32>
    %c1_i32_182 = arith.constant 1 : i32
    %354 = vector.broadcast %c1_i32_182 : i32 to vector<32x128xi32>
    %355 = arith.cmpi eq, %269, %354 : vector<32x128xi32>
    %c0_183 = arith.constant 0 : index
    %c1_184 = arith.constant 1 : index
    %356 = arith.index_cast %250 : i32 to index
    %c0_185 = arith.constant 0 : index
    %357 = vector.load %arg5[%c0_183, %c1_184, %356, %c0_185] : memref<1x8x64x128xf32, #tpu.memory_space<vmem>>, vector<1x1x32x128xf32>
    %358 = vector.shape_cast %357 : vector<1x1x32x128xf32> to vector<32x128xf32>
    %c0_186 = arith.constant 0 : index
    %c1_187 = arith.constant 1 : index
    %359 = arith.index_cast %250 : i32 to index
    %c0_188 = arith.constant 0 : index
    %360 = vector.load %arg6[%c0_186, %c1_187, %359, %c0_188] : memref<1x8x64x128xf32, #tpu.memory_space<vmem>>, vector<1x1x32x128xf32>
    %361 = vector.shape_cast %360 : vector<1x1x32x128xf32> to vector<32x128xf32>
    %362 = arith.subf %358, %329 : vector<32x128xf32>
    %363 = math.exp %362 : vector<32x128xf32>
    %364 = arith.addf %348, %363 : vector<32x128xf32>
    %365 = arith.subf %361, %333 : vector<32x128xf32>
    %366 = math.exp %365 : vector<32x128xf32>
    %367 = arith.addf %351, %366 : vector<32x128xf32>
    %368 = arith.select %355, %358, %352 : vector<32x128xi1>, vector<32x128xf32>
    %369 = arith.select %355, %361, %353 : vector<32x128xi1>, vector<32x128xf32>
    %c2_i32_189 = arith.constant 2 : i32
    %370 = vector.broadcast %c2_i32_189 : i32 to vector<32x128xi32>
    %371 = arith.cmpi eq, %269, %370 : vector<32x128xi32>
    %c0_190 = arith.constant 0 : index
    %c2_191 = arith.constant 2 : index
    %372 = arith.index_cast %250 : i32 to index
    %c0_192 = arith.constant 0 : index
    %373 = vector.load %arg5[%c0_190, %c2_191, %372, %c0_192] : memref<1x8x64x128xf32, #tpu.memory_space<vmem>>, vector<1x1x32x128xf32>
    %374 = vector.shape_cast %373 : vector<1x1x32x128xf32> to vector<32x128xf32>
    %c0_193 = arith.constant 0 : index
    %c2_194 = arith.constant 2 : index
    %375 = arith.index_cast %250 : i32 to index
    %c0_195 = arith.constant 0 : index
    %376 = vector.load %arg6[%c0_193, %c2_194, %375, %c0_195] : memref<1x8x64x128xf32, #tpu.memory_space<vmem>>, vector<1x1x32x128xf32>
    %377 = vector.shape_cast %376 : vector<1x1x32x128xf32> to vector<32x128xf32>
    %378 = arith.subf %374, %329 : vector<32x128xf32>
    %379 = math.exp %378 : vector<32x128xf32>
    %380 = arith.addf %364, %379 : vector<32x128xf32>
    %381 = arith.subf %377, %333 : vector<32x128xf32>
    %382 = math.exp %381 : vector<32x128xf32>
    %383 = arith.addf %367, %382 : vector<32x128xf32>
    %384 = arith.select %371, %374, %368 : vector<32x128xi1>, vector<32x128xf32>
    %385 = arith.select %371, %377, %369 : vector<32x128xi1>, vector<32x128xf32>
    %c3_i32_196 = arith.constant 3 : i32
    %386 = vector.broadcast %c3_i32_196 : i32 to vector<32x128xi32>
    %387 = arith.cmpi eq, %269, %386 : vector<32x128xi32>
    %c0_197 = arith.constant 0 : index
    %c3_198 = arith.constant 3 : index
    %388 = arith.index_cast %250 : i32 to index
    %c0_199 = arith.constant 0 : index
    %389 = vector.load %arg5[%c0_197, %c3_198, %388, %c0_199] : memref<1x8x64x128xf32, #tpu.memory_space<vmem>>, vector<1x1x32x128xf32>
    %390 = vector.shape_cast %389 : vector<1x1x32x128xf32> to vector<32x128xf32>
    %c0_200 = arith.constant 0 : index
    %c3_201 = arith.constant 3 : index
    %391 = arith.index_cast %250 : i32 to index
    %c0_202 = arith.constant 0 : index
    %392 = vector.load %arg6[%c0_200, %c3_201, %391, %c0_202] : memref<1x8x64x128xf32, #tpu.memory_space<vmem>>, vector<1x1x32x128xf32>
    %393 = vector.shape_cast %392 : vector<1x1x32x128xf32> to vector<32x128xf32>
    %394 = arith.subf %390, %329 : vector<32x128xf32>
    %395 = math.exp %394 : vector<32x128xf32>
    %396 = arith.addf %380, %395 : vector<32x128xf32>
    %397 = arith.subf %393, %333 : vector<32x128xf32>
    %398 = math.exp %397 : vector<32x128xf32>
    %399 = arith.addf %383, %398 : vector<32x128xf32>
    %400 = arith.select %387, %390, %384 : vector<32x128xi1>, vector<32x128xf32>
    %401 = arith.select %387, %393, %385 : vector<32x128xi1>, vector<32x128xf32>
    %c4_i32_203 = arith.constant 4 : i32
    %402 = vector.broadcast %c4_i32_203 : i32 to vector<32x128xi32>
    %403 = arith.cmpi eq, %269, %402 : vector<32x128xi32>
    %c0_204 = arith.constant 0 : index
    %c4_205 = arith.constant 4 : index
    %404 = arith.index_cast %250 : i32 to index
    %c0_206 = arith.constant 0 : index
    %405 = vector.load %arg5[%c0_204, %c4_205, %404, %c0_206] : memref<1x8x64x128xf32, #tpu.memory_space<vmem>>, vector<1x1x32x128xf32>
    %406 = vector.shape_cast %405 : vector<1x1x32x128xf32> to vector<32x128xf32>
    %c0_207 = arith.constant 0 : index
    %c4_208 = arith.constant 4 : index
    %407 = arith.index_cast %250 : i32 to index
    %c0_209 = arith.constant 0 : index
    %408 = vector.load %arg6[%c0_207, %c4_208, %407, %c0_209] : memref<1x8x64x128xf32, #tpu.memory_space<vmem>>, vector<1x1x32x128xf32>
    %409 = vector.shape_cast %408 : vector<1x1x32x128xf32> to vector<32x128xf32>
    %410 = arith.subf %406, %329 : vector<32x128xf32>
    %411 = math.exp %410 : vector<32x128xf32>
    %412 = arith.addf %396, %411 : vector<32x128xf32>
    %413 = arith.subf %409, %333 : vector<32x128xf32>
    %414 = math.exp %413 : vector<32x128xf32>
    %415 = arith.addf %399, %414 : vector<32x128xf32>
    %416 = arith.select %403, %406, %400 : vector<32x128xi1>, vector<32x128xf32>
    %417 = arith.select %403, %409, %401 : vector<32x128xi1>, vector<32x128xf32>
    %c5_i32_210 = arith.constant 5 : i32
    %418 = vector.broadcast %c5_i32_210 : i32 to vector<32x128xi32>
    %419 = arith.cmpi eq, %269, %418 : vector<32x128xi32>
    %c0_211 = arith.constant 0 : index
    %c5_212 = arith.constant 5 : index
    %420 = arith.index_cast %250 : i32 to index
    %c0_213 = arith.constant 0 : index
    %421 = vector.load %arg5[%c0_211, %c5_212, %420, %c0_213] : memref<1x8x64x128xf32, #tpu.memory_space<vmem>>, vector<1x1x32x128xf32>
    %422 = vector.shape_cast %421 : vector<1x1x32x128xf32> to vector<32x128xf32>
    %c0_214 = arith.constant 0 : index
    %c5_215 = arith.constant 5 : index
    %423 = arith.index_cast %250 : i32 to index
    %c0_216 = arith.constant 0 : index
    %424 = vector.load %arg6[%c0_214, %c5_215, %423, %c0_216] : memref<1x8x64x128xf32, #tpu.memory_space<vmem>>, vector<1x1x32x128xf32>
    %425 = vector.shape_cast %424 : vector<1x1x32x128xf32> to vector<32x128xf32>
    %426 = arith.subf %422, %329 : vector<32x128xf32>
    %427 = math.exp %426 : vector<32x128xf32>
    %428 = arith.addf %412, %427 : vector<32x128xf32>
    %429 = arith.subf %425, %333 : vector<32x128xf32>
    %430 = math.exp %429 : vector<32x128xf32>
    %431 = arith.addf %415, %430 : vector<32x128xf32>
    %432 = arith.select %419, %422, %416 : vector<32x128xi1>, vector<32x128xf32>
    %433 = arith.select %419, %425, %417 : vector<32x128xi1>, vector<32x128xf32>
    %c6_i32_217 = arith.constant 6 : i32
    %434 = vector.broadcast %c6_i32_217 : i32 to vector<32x128xi32>
    %435 = arith.cmpi eq, %269, %434 : vector<32x128xi32>
    %c0_218 = arith.constant 0 : index
    %c6_219 = arith.constant 6 : index
    %436 = arith.index_cast %250 : i32 to index
    %c0_220 = arith.constant 0 : index
    %437 = vector.load %arg5[%c0_218, %c6_219, %436, %c0_220] : memref<1x8x64x128xf32, #tpu.memory_space<vmem>>, vector<1x1x32x128xf32>
    %438 = vector.shape_cast %437 : vector<1x1x32x128xf32> to vector<32x128xf32>
    %c0_221 = arith.constant 0 : index
    %c6_222 = arith.constant 6 : index
    %439 = arith.index_cast %250 : i32 to index
    %c0_223 = arith.constant 0 : index
    %440 = vector.load %arg6[%c0_221, %c6_222, %439, %c0_223] : memref<1x8x64x128xf32, #tpu.memory_space<vmem>>, vector<1x1x32x128xf32>
    %441 = vector.shape_cast %440 : vector<1x1x32x128xf32> to vector<32x128xf32>
    %442 = arith.subf %438, %329 : vector<32x128xf32>
    %443 = math.exp %442 : vector<32x128xf32>
    %444 = arith.addf %428, %443 : vector<32x128xf32>
    %445 = arith.subf %441, %333 : vector<32x128xf32>
    %446 = math.exp %445 : vector<32x128xf32>
    %447 = arith.addf %431, %446 : vector<32x128xf32>
    %448 = arith.select %435, %438, %432 : vector<32x128xi1>, vector<32x128xf32>
    %449 = arith.select %435, %441, %433 : vector<32x128xi1>, vector<32x128xf32>
    %c7_i32_224 = arith.constant 7 : i32
    %450 = vector.broadcast %c7_i32_224 : i32 to vector<32x128xi32>
    %451 = arith.cmpi eq, %269, %450 : vector<32x128xi32>
    %c0_225 = arith.constant 0 : index
    %c7_226 = arith.constant 7 : index
    %452 = arith.index_cast %250 : i32 to index
    %c0_227 = arith.constant 0 : index
    %453 = vector.load %arg5[%c0_225, %c7_226, %452, %c0_227] : memref<1x8x64x128xf32, #tpu.memory_space<vmem>>, vector<1x1x32x128xf32>
    %454 = vector.shape_cast %453 : vector<1x1x32x128xf32> to vector<32x128xf32>
    %c0_228 = arith.constant 0 : index
    %c7_229 = arith.constant 7 : index
    %455 = arith.index_cast %250 : i32 to index
    %c0_230 = arith.constant 0 : index
    %456 = vector.load %arg6[%c0_228, %c7_229, %455, %c0_230] : memref<1x8x64x128xf32, #tpu.memory_space<vmem>>, vector<1x1x32x128xf32>
    %457 = vector.shape_cast %456 : vector<1x1x32x128xf32> to vector<32x128xf32>
    %458 = arith.subf %454, %329 : vector<32x128xf32>
    %459 = math.exp %458 : vector<32x128xf32>
    %460 = arith.addf %444, %459 : vector<32x128xf32>
    %461 = arith.subf %457, %333 : vector<32x128xf32>
    %462 = math.exp %461 : vector<32x128xf32>
    %463 = arith.addf %447, %462 : vector<32x128xf32>
    %464 = arith.select %451, %454, %448 : vector<32x128xi1>, vector<32x128xf32>
    %465 = arith.select %451, %457, %449 : vector<32x128xi1>, vector<32x128xf32>
    %466 = math.log %460 : vector<32x128xf32>
    %467 = arith.addf %466, %329 : vector<32x128xf32>
    %468 = arith.subf %467, %464 : vector<32x128xf32>
    %cst_231 = arith.constant 0.000000e+00 : f32
    %469 = vector.broadcast %cst_231 : f32 to vector<32x128xf32>
    %470 = arith.select %271, %469, %468 : vector<32x128xi1>, vector<32x128xf32>
    %471 = math.log %463 : vector<32x128xf32>
    %472 = arith.addf %471, %333 : vector<32x128xf32>
    %473 = arith.subf %472, %465 : vector<32x128xf32>
    %cst_232 = arith.constant 0.000000e+00 : f32
    %474 = vector.broadcast %cst_232 : f32 to vector<32x128xf32>
    %475 = arith.select %271, %474, %473 : vector<32x128xi1>, vector<32x128xf32>
    %476 = vector.broadcast %4 : f32 to vector<32x128xf32>
    %477 = arith.mulf %476, %470 : vector<32x128xf32>
    %478 = vector.broadcast %1 : f32 to vector<32x128xf32>
    %479 = arith.addf %477, %478 : vector<32x128xf32>
    %c0_233 = arith.constant 0 : index
    %480 = arith.index_cast %250 : i32 to index
    %c0_234 = arith.constant 0 : index
    %481 = vector.load %arg9[%c0_233, %480, %c0_234] : memref<1x64x128xf32, #tpu.memory_space<vmem>>, vector<1x32x128xf32>
    %482 = vector.shape_cast %481 : vector<1x32x128xf32> to vector<32x128xf32>
    %483 = vector.shape_cast %479 : vector<32x128xf32> to vector<1x32x128xf32>
    tpu.vector_store %arg9[%c0_233, %480, %c0_234], %483 {strides = array<i32>} : memref<1x64x128xf32, #tpu.memory_space<vmem>>, vector<1x32x128xf32>,
    %484 = vector.broadcast %5 : f32 to vector<32x128xf32>
    %485 = arith.mulf %484, %475 : vector<32x128xf32>
    %486 = vector.broadcast %2 : f32 to vector<32x128xf32>
    %487 = arith.addf %485, %486 : vector<32x128xf32>
    %c0_235 = arith.constant 0 : index
    %488 = arith.index_cast %250 : i32 to index
    %c0_236 = arith.constant 0 : index
    %489 = vector.load %arg10[%c0_235, %488, %c0_236] : memref<1x64x128xf32, #tpu.memory_space<vmem>>, vector<1x32x128xf32>
    %490 = vector.shape_cast %489 : vector<1x32x128xf32> to vector<32x128xf32>
    %491 = vector.shape_cast %487 : vector<32x128xf32> to vector<1x32x128xf32>
    tpu.vector_store %arg10[%c0_235, %488, %c0_236], %491 {strides = array<i32>} : memref<1x64x128xf32, #tpu.memory_space<vmem>>, vector<1x32x128xf32>,
    %c2_i32_237 = arith.constant 2 : i32
    return
  }
  func.func @transform_0(%arg0: i32, %arg1: i32, %arg2: memref<6xf32, #tpu.memory_space<smem>>) -> (i32, i32, i32) {
    %c0_i32 = arith.constant 0 : i32
    %c0_i32_0 = arith.constant 0 : i32
    return %arg0, %arg1, %c0_i32 : i32, i32, i32
  }
  func.func @transform_1(%arg0: i32, %arg1: i32, %arg2: memref<6xf32, #tpu.memory_space<smem>>) -> (i32, i32, i32) {
    %c0_i32 = arith.constant 0 : i32
    %c0_i32_0 = arith.constant 0 : i32
    return %arg0, %arg1, %c0_i32 : i32, i32, i32
  }
  func.func @transform_2(%arg0: i32, %arg1: i32, %arg2: memref<6xf32, #tpu.memory_space<smem>>) -> (i32, i32, i32, i32) {
    %c0_i32 = arith.constant 0 : i32
    %c0_i32_0 = arith.constant 0 : i32
    %c0_i32_1 = arith.constant 0 : i32
    return %arg0, %c0_i32, %arg1, %c0_i32_0 : i32, i32, i32, i32
  }
  func.func @transform_3(%arg0: i32, %arg1: i32, %arg2: memref<6xf32, #tpu.memory_space<smem>>) -> (i32, i32, i32, i32) {
    %c0_i32 = arith.constant 0 : i32
    %c0_i32_0 = arith.constant 0 : i32
    %c0_i32_1 = arith.constant 0 : i32
    return %arg0, %c0_i32, %arg1, %c0_i32_0 : i32, i32, i32, i32
  }
  func.func @transform_4(%arg0: i32, %arg1: i32, %arg2: memref<6xf32, #tpu.memory_space<smem>>) -> (i32, i32, i32) {
    %c0_i32 = arith.constant 0 : i32
    %c0_i32_0 = arith.constant 0 : i32
    return %arg0, %arg1, %c0_i32 : i32, i32, i32
  }
  func.func @transform_5(%arg0: i32, %arg1: i32, %arg2: memref<6xf32, #tpu.memory_space<smem>>) -> (i32, i32, i32) {
    %c0_i32 = arith.constant 0 : i32
    %c0_i32_0 = arith.constant 0 : i32
    return %arg0, %arg1, %c0_i32 : i32, i32, i32
  }
  func.func @transform_6(%arg0: i32, %arg1: i32, %arg2: memref<6xf32, #tpu.memory_space<smem>>) -> (i32, i32, i32) {
    %c0_i32 = arith.constant 0 : i32
    %c0_i32_0 = arith.constant 0 : i32
    return %arg0, %arg1, %c0_i32 : i32, i32, i32
  }
  func.func @transform_7(%arg0: i32, %arg1: i32, %arg2: memref<6xf32, #tpu.memory_space<smem>>) -> (i32, i32, i32) {
    %c0_i32 = arith.constant 0 : i32
    %c0_i32_0 = arith.constant 0 : i32
    return %arg0, %arg1, %c0_i32 : i32, i32, i32
  }
}

</mosaic_0001>

<llo_original>
// kernel: multitask_loss.1
$region0: #{multitask_loss.1}
  #allocation0 [shape = 'u32[]', space=smem, size = 0x4, offset = 0x4, fixed_abs, tag = 'smem constant byte address 0x4 - core index']
  #allocation1 [shape = 'u32[144,128]{1,0:T(1,128)}', space=vmem, size = 0x12000, scoped, tag = 'internal scratch']
  #allocation2 [shape = 's32[1]{0}', space=sflag, size = 0x4, scoped, tag = 'scoped memory for multitask_loss.1']
  #allocation3 [shape = 'u8[512]{0}', space=smem, size = 0x200, scoped, tag = 'prefetched SMEM operand 0']
  %s0 = inlined_call_operand.vmem [shape: f32[6], index: 0, kind: input, shape index: {}]
  %s1 = inlined_call_operand.hbm [shape: f32[2,64,128], index: 1, kind: input, shape index: {}]
  %s2 = inlined_call_operand.hbm [shape: f32[2,64,128], index: 2, kind: input, shape index: {}]
  %s3 = inlined_call_operand.hbm [shape: f32[2,8,64,128], index: 3, kind: input, shape index: {}]
  %s4 = inlined_call_operand.hbm [shape: f32[2,8,64,128], index: 4, kind: input, shape index: {}]
  %s5 = inlined_call_operand.hbm [shape: s32[2,64,128], index: 5, kind: input, shape index: {}]
  %s6 = inlined_call_operand.hbm [shape: f32[2,64,128], index: 6, kind: output, shape index: {0}]
  %s7 = inlined_call_operand.hbm [shape: f32[2,64,128], index: 7, kind: output, shape index: {1}]
  %s8 = inlined_call_operand.hbm [shape: f32[2,64,128], index: 8, kind: output, shape index: {2}]
  %9 = xla_tuple %s6, %s7, %s8
  %s10 = sld [smem:[#allocation0]]
  $region89: #{multitask_loss.1} parent=0
    _
  %s12 = ssub.s32 1, %s10
  %s13 = scalar_select 0, %s12, %s10
  %s14 = sshll.u32 %s0, 4
  %s15 = int_to_ptr.vmem [resolvable:$true] %s14
  %17 = dma.vmem_to_smem %s15, 16, [#allocation3], [#allocation2]
  %18 = dma.done [#allocation2], 16
  %19 = sfence
  $region1: #{multitask_loss.1} parent=0
    #allocation4 [shape = 'u8[65536]{0}', space=vmem, size = 0x10000, scoped, tag = 'input window, operand 1']
    #allocation5 [shape = 's32[2]{0}', space=sflag, size = 0x8, scoped, tag = 'scoped memory for multitask_loss.1']
    #allocation6 [shape = 's32[2]{0}', space=sflag, size = 0x8, scoped, tag = 'scoped memory for multitask_loss.1']
    #allocation7 [shape = 'u8[65536]{0}', space=vmem, size = 0x10000, scoped, tag = 'input window, operand 2']
    #allocation8 [shape = 's32[2]{0}', space=sflag, size = 0x8, scoped, tag = 'scoped memory for multitask_loss.1']
    #allocation9 [shape = 'u8[524288]{0}', space=vmem, size = 0x80000, scoped, tag = 'input window, operand 3']
    #allocation10 [shape = 'u8[524288]{0}', space=vmem, size = 0x80000, scoped, tag = 'input window, operand 4']
    #allocation11 [shape = 's32[2]{0}', space=sflag, size = 0x8, scoped, tag = 'scoped memory for multitask_loss.1']
    #allocation12 [shape = 'u8[65536]{0}', space=vmem, size = 0x10000, scoped, tag = 'input window, operand 5']
    #allocation13 [shape = 'u8[65536]{0}', space=vmem, size = 0x10000, scoped, tag = 'output window, operand 0']
    #allocation14 [shape = 'u8[65536]{0}', space=vmem, size = 0x10000, scoped, tag = 'output window, operand 1']
    #allocation15 [shape = 's32[2]{0}', space=sflag, size = 0x8, scoped, tag = 'scoped memory for multitask_loss.1']
    #allocation16 [shape = 'u8[65536]{0}', space=vmem, size = 0x10000, scoped, tag = 'output window, operand 2']
    %20 = vsyncpa [#allocation5], 0
    %s21 = scalar_lea.sflag [#allocation5], 1
    %22 = vsyncpa %s21, 0
    %23 = vsyncpa [#allocation8], 0
    %s24 = scalar_lea.sflag [#allocation8], 1
    %25 = vsyncpa %s24, 0
    %26 = vsyncpa [#allocation11], 0
    %s27 = scalar_lea.sflag [#allocation11], 1
    %28 = vsyncpa %s27, 0
    %29 = vsyncpa [#allocation6], 0
    %s30 = scalar_lea.sflag [#allocation6], 1
    %31 = vsyncpa %s30, 0
    %32 = vsyncpa [#allocation15], 0
    %s33 = scalar_lea.sflag [#allocation15], 1
    %34 = vsyncpa %s33, 0
    loop: start=0, step=1, limit=4
    $region2: #{multitask_loss.1} parent=1 // loop_pre_header
      _
    $region3: #{multitask_loss.1} parent=1 // loop_header
      %s36 = sphi 0, %s40
      %p37 = scmp.ge.s32.totalorder %s36, 4
      %s43 = sphi 0, %s55
      %s44 = sphi 0, %s51
      %s45 = sphi 0, %s43
      %s46 = sphi 0, %s44
      %s47 = sphi 0, %s45
      %s48 = sphi 0, %s46
      %s60 = sphi 0, %s62
      %s63 = sphi 0, %s60
      %s64 = sphi 0, %s63
      %s80 = sphi 0, %s64
      %s88 = sphi 0, %s90
      %s91 = sphi 0, %s88
      %s92 = sphi 0, %s91
      %s108 = sphi 0, %s92
      %s116 = sphi 0, %s118
      %s119 = sphi 0, %s116
      %s120 = sphi 0, %s119
      %s136 = sphi 0, %s120
      %s144 = sphi 0, %s146
      %s147 = sphi 0, %s144
      %s148 = sphi 0, %s147
      %s164 = sphi 0, %s148
      %s172 = sphi 0, %s174
      %s175 = sphi 0, %s172
      %s176 = sphi 0, %s175
      %s192 = sphi 0, %s176
      %s200 = sphi 0, %s202
      %s203 = sphi 0, %s200
      %s204 = sphi 0, %s203
      %s220 = sphi 0, %s204
      %s228 = sphi 0, %s230
      %s231 = sphi 0, %s228
      %s232 = sphi 0, %s231
      %s248 = sphi 0, %s232
      %s256 = sphi 0, %s258
      %s259 = sphi 0, %s256
      %s260 = sphi 0, %s259
      %s276 = sphi 0, %s260
    $region4: #{multitask_loss.1} parent=1 // loop_header_branch
      %39 = sbr.rel (%p37) target = $region8
    $region5: #{multitask_loss.1} parent=1 // loop_body
      %s41 = ssub.s32 %s36, 1
      %s42 = ssub.s32 %s36, 2
      %s49 = sadd.s32 1, %s44
      %p50 = scmp.ge.s32.totalorder %s49, 1
      %s51 = scalar_select %p50, 0, %s49
      %s52 = sadd.s32 1, %s43
      %s53 = scalar_select %p50, %s52, %s43
      %p54 = scmp.ge.s32.totalorder %s53, 2
      %s55 = scalar_select %p54, 0, %s53
      %s56 = ssub.s32 %s43, %s55
      %s57 = ssub.s32 %s44, %s51
      %s58 = sor.u32 %s56, %s57
      %p59 = scmp.eq.s32.totalorder %s58, 0
      %s61 = sadd.s32 %s60, 1
      %s62 = scalar_select %p59, %s60, %s61
      %p65 = pneg %p59
      %p66 = scmp.eq.s32.totalorder %s36, 1
      %p67 = por %p65, %p66
      %p68 = scmp.ne.s32.totalorder %s60, %s63
      %p69 = scmp.eq.s32.totalorder %s36, 0
      %p70 = por %p68, %p69
      %p71 = scmp.ne.s32.totalorder %s60, %s63
      %p72 = scmp.eq.s32.totalorder %s41, 1
      %p73 = por %p71, %p72
      %p74 = scmp.ne.s32.totalorder %s63, %s64
      %p75 = scmp.eq.s32.totalorder %s41, 0
      %p76 = por %p74, %p75
      %p77 = scmp.ne.s32.totalorder %s63, %s64
      %p78 = scmp.eq.s32.totalorder %s42, 1
      %p79 = por %p77, %p78
      %p81 = scmp.ne.s32.totalorder %s64, %s80
      %p82 = scmp.eq.s32.totalorder %s42, 0
      %p83 = por %p81, %p82
      %s84 = ssub.s32 %s43, %s55
      %s85 = ssub.s32 %s44, %s51
      %s86 = sor.u32 %s84, %s85
      %p87 = scmp.eq.s32.totalorder %s86, 0
      %s89 = sadd.s32 %s88, 1
      %s90 = scalar_select %p87, %s88, %s89
      %p93 = pneg %p87
      %p94 = scmp.eq.s32.totalorder %s36, 1
      %p95 = por %p93, %p94
      %p96 = scmp.ne.s32.totalorder %s88, %s91
      %p97 = scmp.eq.s32.totalorder %s36, 0
      %p98 = por %p96, %p97
      %p99 = scmp.ne.s32.totalorder %s88, %s91
      %p100 = scmp.eq.s32.totalorder %s41, 1
      %p101 = por %p99, %p100
      %p102 = scmp.ne.s32.totalorder %s91, %s92
      %p103 = scmp.eq.s32.totalorder %s41, 0
      %p104 = por %p102, %p103
      %p105 = scmp.ne.s32.totalorder %s91, %s92
      %p106 = scmp.eq.s32.totalorder %s42, 1
      %p107 = por %p105, %p106
      %p109 = scmp.ne.s32.totalorder %s92, %s108
      %p110 = scmp.eq.s32.totalorder %s42, 0
      %p111 = por %p109, %p110
      %s112 = ssub.s32 %s43, %s55
      %s113 = ssub.s32 %s44, %s51
      %s114 = sor.u32 %s112, %s113
      %p115 = scmp.eq.s32.totalorder %s114, 0
      %s117 = sadd.s32 %s116, 1
      %s118 = scalar_select %p115, %s116, %s117
      %p121 = pneg %p115
      %p122 = scmp.eq.s32.totalorder %s36, 1
      %p123 = por %p121, %p122
      %p124 = scmp.ne.s32.totalorder %s116, %s119
      %p125 = scmp.eq.s32.totalorder %s36, 0
      %p126 = por %p124, %p125
      %p127 = scmp.ne.s32.totalorder %s116, %s119
      %p128 = scmp.eq.s32.totalorder %s41, 1
      %p129 = por %p127, %p128
      %p130 = scmp.ne.s32.totalorder %s119, %s120
      %p131 = scmp.eq.s32.totalorder %s41, 0
      %p132 = por %p130, %p131
      %p133 = scmp.ne.s32.totalorder %s119, %s120
      %p134 = scmp.eq.s32.totalorder %s42, 1
      %p135 = por %p133, %p134
      %p137 = scmp.ne.s32.totalorder %s120, %s136
      %p138 = scmp.eq.s32.totalorder %s42, 0
      %p139 = por %p137, %p138
      %s140 = ssub.s32 %s43, %s55
      %s141 = ssub.s32 %s44, %s51
      %s142 = sor.u32 %s140, %s141
      %p143 = scmp.eq.s32.totalorder %s142, 0
      %s145 = sadd.s32 %s144, 1
      %s146 = scalar_select %p143, %s144, %s145
      %p149 = pneg %p143
      %p150 = scmp.eq.s32.totalorder %s36, 1
      %p151 = por %p149, %p150
      %p152 = scmp.ne.s32.totalorder %s144, %s147
      %p153 = scmp.eq.s32.totalorder %s36, 0
      %p154 = por %p152, %p153
      %p155 = scmp.ne.s32.totalorder %s144, %s147
      %p156 = scmp.eq.s32.totalorder %s41, 1
      %p157 = por %p155, %p156
      %p158 = scmp.ne.s32.totalorder %s147, %s148
      %p159 = scmp.eq.s32.totalorder %s41, 0
      %p160 = por %p158, %p159
      %p161 = scmp.ne.s32.totalorder %s147, %s148
      %p162 = scmp.eq.s32.totalorder %s42, 1
      %p163 = por %p161, %p162
      %p165 = scmp.ne.s32.totalorder %s148, %s164
      %p166 = scmp.eq.s32.totalorder %s42, 0
      %p167 = por %p165, %p166
      %s168 = ssub.s32 %s43, %s55
      %s169 = ssub.s32 %s44, %s51
      %s170 = sor.u32 %s168, %s169
      %p171 = scmp.eq.s32.totalorder %s170, 0
      %s173 = sadd.s32 %s172, 1
      %s174 = scalar_select %p171, %s172, %s173
      %p177 = pneg %p171
      %p178 = scmp.eq.s32.totalorder %s36, 1
      %p179 = por %p177, %p178
      %p180 = scmp.ne.s32.totalorder %s172, %s175
      %p181 = scmp.eq.s32.totalorder %s36, 0
      %p182 = por %p180, %p181
      %p183 = scmp.ne.s32.totalorder %s172, %s175
      %p184 = scmp.eq.s32.totalorder %s41, 1
      %p185 = por %p183, %p184
      %p186 = scmp.ne.s32.totalorder %s175, %s176
      %p187 = scmp.eq.s32.totalorder %s41, 0
      %p188 = por %p186, %p187
      %p189 = scmp.ne.s32.totalorder %s175, %s176
      %p190 = scmp.eq.s32.totalorder %s42, 1
      %p191 = por %p189, %p190
      %p193 = scmp.ne.s32.totalorder %s176, %s192
      %p194 = scmp.eq.s32.totalorder %s42, 0
      %p195 = por %p193, %p194
      %s196 = ssub.s32 %s43, %s55
      %s197 = ssub.s32 %s44, %s51
      %s198 = sor.u32 %s196, %s197
      %p199 = scmp.eq.s32.totalorder %s198, 0
      %s201 = sadd.s32 %s200, 1
      %s202 = scalar_select %p199, %s200, %s201
      %p205 = pneg %p199
      %p206 = scmp.eq.s32.totalorder %s36, 1
      %p207 = por %p205, %p206
      %p208 = scmp.ne.s32.totalorder %s200, %s203
      %p209 = scmp.eq.s32.totalorder %s36, 0
      %p210 = por %p208, %p209
      %p211 = scmp.ne.s32.totalorder %s200, %s203
      %p212 = scmp.eq.s32.totalorder %s41, 1
      %p213 = por %p211, %p212
      %p214 = scmp.ne.s32.totalorder %s203, %s204
      %p215 = scmp.eq.s32.totalorder %s41, 0
      %p216 = por %p214, %p215
      %p217 = scmp.ne.s32.totalorder %s203, %s204
      %p218 = scmp.eq.s32.totalorder %s42, 1
      %p219 = por %p217, %p218
      %p221 = scmp.ne.s32.totalorder %s204, %s220
      %p222 = scmp.eq.s32.totalorder %s42, 0
      %p223 = por %p221, %p222
      %s224 = ssub.s32 %s43, %s55
      %s225 = ssub.s32 %s44, %s51
      %s226 = sor.u32 %s224, %s225
      %p227 = scmp.eq.s32.totalorder %s226, 0
      %s229 = sadd.s32 %s228, 1
      %s230 = scalar_select %p227, %s228, %s229
      %p233 = pneg %p227
      %p234 = scmp.eq.s32.totalorder %s36, 1
      %p235 = por %p233, %p234
      %p236 = scmp.ne.s32.totalorder %s228, %s231
      %p237 = scmp.eq.s32.totalorder %s36, 0
      %p238 = por %p236, %p237
      %p239 = scmp.ne.s32.totalorder %s228, %s231
      %p240 = scmp.eq.s32.totalorder %s41, 1
      %p241 = por %p239, %p240
      %p242 = scmp.ne.s32.totalorder %s231, %s232
      %p243 = scmp.eq.s32.totalorder %s41, 0
      %p244 = por %p242, %p243
      %p245 = scmp.ne.s32.totalorder %s231, %s232
      %p246 = scmp.eq.s32.totalorder %s42, 1
      %p247 = por %p245, %p246
      %p249 = scmp.ne.s32.totalorder %s232, %s248
      %p250 = scmp.eq.s32.totalorder %s42, 0
      %p251 = por %p249, %p250
      %s252 = ssub.s32 %s43, %s55
      %s253 = ssub.s32 %s44, %s51
      %s254 = sor.u32 %s252, %s253
      %p255 = scmp.eq.s32.totalorder %s254, 0
      %s257 = sadd.s32 %s256, 1
      %s258 = scalar_select %p255, %s256, %s257
      %p261 = pneg %p255
      %p262 = scmp.eq.s32.totalorder %s36, 1
      %p263 = por %p261, %p262
      %p264 = scmp.ne.s32.totalorder %s256, %s259
      %p265 = scmp.eq.s32.totalorder %s36, 0
      %p266 = por %p264, %p265
      %p267 = scmp.ne.s32.totalorder %s256, %s259
      %p268 = scmp.eq.s32.totalorder %s41, 1
      %p269 = por %p267, %p268
      %p270 = scmp.ne.s32.totalorder %s259, %s260
      %p271 = scmp.eq.s32.totalorder %s41, 0
      %p272 = por %p270, %p271
      %p273 = scmp.ne.s32.totalorder %s259, %s260
      %p274 = scmp.eq.s32.totalorder %s42, 1
      %p275 = por %p273, %p274
      %p277 = scmp.ne.s32.totalorder %s260, %s276
      %p278 = scmp.eq.s32.totalorder %s42, 0
      %p279 = por %p277, %p278
      %p280 = scmp.le.s32.totalorder 1, %s36
      %p281 = scmp.lt.s32.totalorder %s36, 3
      %p282 = pnand %p280, %p281
      %p283 = pneg %p282
      // Predicated region
      $region9: #{multitask_loss.1} parent=5 // pred_check
        _
      $region10: #{multitask_loss.1} parent=5 // pred_check_branch
        %285 = sbr.rel (%p282) target = $region12
      $region11: #{multitask_loss.1} parent=5 // pred_region
        %s286 = ssub.s32 %s36, 1
      $region12: #{multitask_loss.1} parent=5 // pred_fallthru
        _
      %p287 = scmp.lt.s32.totalorder %s36, 2
      // Predicated region
      $region13: #{multitask_loss.1} parent=5 // pred_check
        %p288 = pneg %p287
      $region14: #{multitask_loss.1} parent=5 // pred_check_branch
        %290 = sbr.rel (%p288) target = $region16
      $region15: #{multitask_loss.1} parent=5 // pred_region
        // Predicated region
        $region17: #{multitask_loss.1} parent=15 // pred_check
          %p291 = pneg %p70
        $region18: #{multitask_loss.1} parent=15 // pred_check_branch
          %293 = sbr.rel (%p291) target = $region20
        $region19: #{multitask_loss.1} parent=15 // pred_region
          %s294 = sand.u32 %s60, 1
          %s295 = scalar_lea.sflag [#allocation5], %s294
          %s296 = sand.u32 %s60, 1
          %s297 = smul.addr %s296, 64
          %s298 = scalar_lea.vmem [#allocation4], %s297
          %s299 = smul.u32 8, %s44
          %s301 = ssub.s32 1024, 1024
          %302 = vsyncadd %s295, %s301
          %s303 = smul.addr %s43, 8
          %s304 = sadd.s32 %s299, %s303
          %s305 = smul.addr %s304, 128
          %s306 = scalar_lea.hbm %s1, %s305
          %s307 = sshll.u32 %s298, 4
          %s308 = int_to_ptr.vmem [resolvable:$true] %s307
          %313 = dma.hbm_to_vmem [thread:$0]  %s306, 1024, %s308, %s295, 128, 128, 8
        $region20: #{multitask_loss.1} parent=15 // pred_fallthru
          _
        // Predicated region
        $region21: #{multitask_loss.1} parent=15 // pred_check
          %p314 = pneg %p98
        $region22: #{multitask_loss.1} parent=15 // pred_check_branch
          %316 = sbr.rel (%p314) target = $region24
        $region23: #{multitask_loss.1} parent=15 // pred_region
          %s317 = sand.u32 %s36, 1
          %s318 = scalar_lea.sflag [#allocation8], %s317
          %s319 = sand.u32 %s88, 1
          %s320 = smul.addr %s319, 64
          %s321 = scalar_lea.vmem [#allocation7], %s320
          %s322 = smul.u32 8, %s44
          %s324 = ssub.s32 1024, 1024
          %325 = vsyncadd %s318, %s324
          %s326 = smul.addr %s43, 8
          %s327 = sadd.s32 %s322, %s326
          %s328 = smul.addr %s327, 128
          %s329 = scalar_lea.hbm %s2, %s328
          %s330 = sshll.u32 %s321, 4
          %s331 = int_to_ptr.vmem [resolvable:$true] %s330
          %336 = dma.hbm_to_vmem [thread:$0]  %s329, 1024, %s331, %s318, 128, 128, 8
        $region24: #{multitask_loss.1} parent=15 // pred_fallthru
          _
        // Predicated region
        $region25: #{multitask_loss.1} parent=15 // pred_check
          %p337 = pneg %p126
        $region26: #{multitask_loss.1} parent=15 // pred_check_branch
          %339 = sbr.rel (%p337) target = $region28
        $region27: #{multitask_loss.1} parent=15 // pred_region
          %s340 = sand.u32 %s36, 1
          %s341 = scalar_lea.sflag [#allocation8], %s340
          %s342 = sand.u32 %s116, 1
          %s343 = smul.addr %s342, 512
          %s344 = scalar_lea.vmem [#allocation9], %s343
          %s345 = smul.u32 8, %s44
          %s347 = ssub.s32 8192, 8192
          %348 = vsyncadd %s341, %s347
          %s349 = smul.addr %s43, 64
          %s350 = sadd.s32 %s345, %s349
          %s351 = smul.addr %s350, 128
          %s352 = scalar_lea.hbm %s3, %s351
          %s353 = sshll.u32 %s344, 4
          %s354 = int_to_ptr.vmem [resolvable:$true] %s353
          %359 = dma.hbm_to_vmem [thread:$0]  %s352, 8192, %s354, %s341, 128, 128, 8
        $region28: #{multitask_loss.1} parent=15 // pred_fallthru
          _
        // Predicated region
        $region29: #{multitask_loss.1} parent=15 // pred_check
          %p360 = pneg %p154
        $region30: #{multitask_loss.1} parent=15 // pred_check_branch
          %362 = sbr.rel (%p360) target = $region32
        $region31: #{multitask_loss.1} parent=15 // pred_region
          %s363 = sand.u32 %s36, 1
          %s364 = scalar_lea.sflag [#allocation11], %s363
          %s365 = sand.u32 %s144, 1
          %s366 = smul.addr %s365, 512
          %s367 = scalar_lea.vmem [#allocation10], %s366
          %s368 = smul.u32 8, %s44
          %s370 = ssub.s32 8192, 8192
          %371 = vsyncadd %s364, %s370
          %s372 = smul.addr %s43, 64
          %s373 = sadd.s32 %s368, %s372
          %s374 = smul.addr %s373, 128
          %s375 = scalar_lea.hbm %s4, %s374
          %s376 = sshll.u32 %s367, 4
          %s377 = int_to_ptr.vmem [resolvable:$true] %s376
          %382 = dma.hbm_to_vmem [thread:$0]  %s375, 8192, %s377, %s364, 128, 128, 8
        $region32: #{multitask_loss.1} parent=15 // pred_fallthru
          _
        // Predicated region
        $region33: #{multitask_loss.1} parent=15 // pred_check
          %p383 = pneg %p182
        $region34: #{multitask_loss.1} parent=15 // pred_check_branch
          %385 = sbr.rel (%p383) target = $region36
        $region35: #{multitask_loss.1} parent=15 // pred_region
          %s386 = sand.u32 %s36, 1
          %s387 = scalar_lea.sflag [#allocation11], %s386
          %s388 = sand.u32 %s172, 1
          %s389 = smul.addr %s388, 64
          %s390 = scalar_lea.vmem [#allocation12], %s389
          %s391 = smul.u32 8, %s44
          %s393 = ssub.s32 1024, 1024
          %394 = vsyncadd %s387, %s393
          %s395 = smul.addr %s43, 8
          %s396 = sadd.s32 %s391, %s395
          %s397 = smul.addr %s396, 128
          %s398 = scalar_lea.hbm %s5, %s397
          %s399 = sshll.u32 %s390, 4
          %s400 = int_to_ptr.vmem [resolvable:$true] %s399
          %405 = dma.hbm_to_vmem [thread:$0]  %s398, 1024, %s400, %s387, 128, 128, 8
        $region36: #{multitask_loss.1} parent=15 // pred_fallthru
          _
      $region16: #{multitask_loss.1} parent=5 // pred_fallthru
        _
      %p406 = scmp.le.s32.totalorder 1, %s36
      %p407 = scmp.lt.s32.totalorder %s36, 3
      %p408 = pnand %p406, %p407
      %p409 = pneg %p408
      // Predicated region
      $region37: #{multitask_loss.1} parent=5 // pred_check
        _
      $region38: #{multitask_loss.1} parent=5 // pred_check_branch
        %411 = sbr.rel (%p408) target = $region40
      $region39: #{multitask_loss.1} parent=5 // pred_region
        %s412 = ssub.s32 %s36, 1
        %s413 = sand.u32 %s63, 1
        %s414 = scalar_lea.sflag [#allocation5], %s413
        %s415 = sand.u32 %s63, 1
        %s416 = smul.addr %s415, 64
        %s417 = scalar_lea.vmem [#allocation4], %s416
        // Predicated region
        $region41: #{multitask_loss.1} parent=39 // pred_check
          %p418 = pneg %p76
        $region42: #{multitask_loss.1} parent=39 // pred_check_branch
          %420 = sbr.rel (%p418) target = $region44
        $region43: #{multitask_loss.1} parent=39 // pred_region
          %421 = dma.done %s414, 1024
        $region44: #{multitask_loss.1} parent=39 // pred_fallthru
          _
        %s422 = sand.u32 %s41, 1
        %s423 = scalar_lea.sflag [#allocation8], %s422
        %s424 = sand.u32 %s91, 1
        %s425 = smul.addr %s424, 64
        %s426 = scalar_lea.vmem [#allocation7], %s425
        // Predicated region
        $region45: #{multitask_loss.1} parent=39 // pred_check
          %p427 = pneg %p104
        $region46: #{multitask_loss.1} parent=39 // pred_check_branch
          %429 = sbr.rel (%p427) target = $region48
        $region47: #{multitask_loss.1} parent=39 // pred_region
          %430 = dma.done %s423, 1024
        $region48: #{multitask_loss.1} parent=39 // pred_fallthru
          _
        %s431 = sand.u32 %s41, 1
        %s432 = scalar_lea.sflag [#allocation8], %s431
        %s433 = sand.u32 %s119, 1
        %s434 = smul.addr %s433, 512
        %s435 = scalar_lea.vmem [#allocation9], %s434
        // Predicated region
        $region49: #{multitask_loss.1} parent=39 // pred_check
          %p436 = pneg %p132
        $region50: #{multitask_loss.1} parent=39 // pred_check_branch
          %438 = sbr.rel (%p436) target = $region52
        $region51: #{multitask_loss.1} parent=39 // pred_region
          %439 = dma.done %s432, 8192
        $region52: #{multitask_loss.1} parent=39 // pred_fallthru
          _
        %s440 = sand.u32 %s41, 1
        %s441 = scalar_lea.sflag [#allocation11], %s440
        %s442 = sand.u32 %s147, 1
        %s443 = smul.addr %s442, 512
        %s444 = scalar_lea.vmem [#allocation10], %s443
        // Predicated region
        $region53: #{multitask_loss.1} parent=39 // pred_check
          %p445 = pneg %p160
        $region54: #{multitask_loss.1} parent=39 // pred_check_branch
          %447 = sbr.rel (%p445) target = $region56
        $region55: #{multitask_loss.1} parent=39 // pred_region
          %448 = dma.done %s441, 8192
        $region56: #{multitask_loss.1} parent=39 // pred_fallthru
          _
        %s449 = sand.u32 %s41, 1
        %s450 = scalar_lea.sflag [#allocation11], %s449
        %s451 = sand.u32 %s175, 1
        %s452 = smul.addr %s451, 64
        %s453 = scalar_lea.vmem [#allocation12], %s452
        // Predicated region
        $region57: #{multitask_loss.1} parent=39 // pred_check
          %p454 = pneg %p188
        $region58: #{multitask_loss.1} parent=39 // pred_check_branch
          %456 = sbr.rel (%p454) target = $region60
        $region59: #{multitask_loss.1} parent=39 // pred_region
          %457 = dma.done %s450, 1024
        $region60: #{multitask_loss.1} parent=39 // pred_fallthru
          _
        %s458 = sand.u32 %s63, 1
        %s459 = scalar_lea.sflag [#allocation5], %s458
        %s460 = sand.u32 %s63, 1
        %s461 = smul.addr %s460, 64
        %s462 = scalar_lea.vmem [#allocation4], %s461
        %p463 = pneg %p76
        %p464 = pneg %p73
        %s465 = sand.u32 %s41, 1
        %s466 = scalar_lea.sflag [#allocation8], %s465
        %s467 = sand.u32 %s91, 1
        %s468 = smul.addr %s467, 64
        %s469 = scalar_lea.vmem [#allocation7], %s468
        %p470 = pneg %p104
        %p471 = pneg %p101
        %s472 = sand.u32 %s41, 1
        %s473 = scalar_lea.sflag [#allocation8], %s472
        %s474 = sand.u32 %s119, 1
        %s475 = smul.addr %s474, 512
        %s476 = scalar_lea.vmem [#allocation9], %s475
        %p477 = pneg %p132
        %p478 = pneg %p129
        %s479 = sand.u32 %s41, 1
        %s480 = scalar_lea.sflag [#allocation11], %s479
        %s481 = sand.u32 %s147, 1
        %s482 = smul.addr %s481, 512
        %s483 = scalar_lea.vmem [#allocation10], %s482
        %p484 = pneg %p160
        %p485 = pneg %p157
        %s486 = sand.u32 %s41, 1
        %s487 = scalar_lea.sflag [#allocation11], %s486
        %s488 = sand.u32 %s175, 1
        %s489 = smul.addr %s488, 64
        %s490 = scalar_lea.vmem [#allocation12], %s489
        %p491 = pneg %p188
        %p492 = pneg %p185
        %p493 = pneg %p216
        %p494 = pneg %p213
        %s495 = sand.u32 %s203, 1
        %s496 = scalar_lea.sflag [#allocation6], %s495
        %s497 = sand.u32 %s203, 1
        %s498 = smul.addr %s497, 64
        %s499 = scalar_lea.vmem [#allocation13], %s498
        %p500 = pneg %p244
        %p501 = pneg %p241
        %s502 = sand.u32 %s41, 1
        %s503 = scalar_lea.sflag [#allocation15], %s502
        %s504 = sand.u32 %s231, 1
        %s505 = smul.addr %s504, 64
        %s506 = scalar_lea.vmem [#allocation14], %s505
        %p507 = pneg %p272
        %p508 = pneg %p269
        %s509 = sand.u32 %s41, 1
        %s510 = scalar_lea.sflag [#allocation15], %s509
        %s511 = sand.u32 %s259, 1
        %s512 = smul.addr %s511, 64
        %s513 = scalar_lea.vmem [#allocation16], %s512
        %s514 = smul.u32 8, %s46
        %s515 = smul.u32 8, %s46
        %s516 = smul.u32 8, %s46
        %s517 = smul.u32 8, %s46
        %s518 = smul.u32 8, %s46
        %s519 = smul.u32 8, %s46
        %s520 = smul.u32 8, %s46
        %s521 = smul.u32 8, %s46
        %s522 = sld [smem:[#allocation3]]
        %s523 = sld [smem:[#allocation3 + $0x1]]
        %s524 = sld [smem:[#allocation3 + $0x2]]
        %s525 = sld [smem:[#allocation3 + $0x3]]
        %s526 = sld [smem:[#allocation3 + $0x4]]
        %s527 = sld [smem:[#allocation3 + $0x5]]
        %v528 = vld [vmem:[%s417] sm:$0xff]
        %v529 = vld [vmem:[%s417 + $0x8] sm:$0xff]
        %v530 = vld [vmem:[%s417 + $0x10] sm:$0xff]
        %v531 = vld [vmem:[%s417 + $0x18] sm:$0xff]
        %v532 = vld [vmem:[%s426] sm:$0xff]
        %v533 = vld [vmem:[%s426 + $0x8] sm:$0xff]
        %v534 = vld [vmem:[%s426 + $0x10] sm:$0xff]
        %v535 = vld [vmem:[%s426 + $0x18] sm:$0xff]
        %v536 = vsub.f32 %v528, %v532
        %v537 = vsub.f32 %v529, %v533
        %v538 = vsub.f32 %v530, %v534
        %v539 = vsub.f32 %v531, %v535
        %v540 = vand.u32 2147483647, %v536
        %v541 = vand.u32 2147483647, %v537
        %v542 = vand.u32 2147483647, %v538
        %v543 = vand.u32 2147483647, %v539
        %v544 = vstv %s525
        %v545 = vmul.f32 %v544, %v540
        %v546 = vmul.f32 %v544, %v541
        %v547 = vmul.f32 %v544, %v542
        %v548 = vmul.f32 %v544, %v543
        %v549 = vstv %s522
        %v550 = vadd.f32 %v545, %v549
        %v551 = vadd.f32 %v546, %v549
        %v552 = vadd.f32 %v547, %v549
        %v553 = vadd.f32 %v548, %v549
        %554 = vst [vmem:[%s499] sm:$0xff] %v550
        %555 = vst [vmem:[%s499 + $0x8] sm:$0xff] %v551
        %556 = vst [vmem:[%s499 + $0x10] sm:$0xff] %v552
        %557 = vst [vmem:[%s499 + $0x18] sm:$0xff] %v553
        %v558 = vld [vmem:[%s453] sm:$0xff]
        %v559 = vld [vmem:[%s453 + $0x8] sm:$0xff]
        %v560 = vld [vmem:[%s453 + $0x10] sm:$0xff]
        %v561 = vld [vmem:[%s453 + $0x18] sm:$0xff]
        %vm562 = vcmp.eq.s32.totalorder %v558, 19
        %vm563 = vcmp.eq.s32.totalorder %v559, 19
        %vm564 = vcmp.eq.s32.totalorder %v560, 19
        %vm565 = vcmp.eq.s32.totalorder %v561, 19
        %v566 = vld [vmem:[%s435] sm:$0xff]
        %v567 = vld [vmem:[%s435 + $0x8] sm:$0xff]
        %v568 = vld [vmem:[%s435 + $0x10] sm:$0xff]
        %v569 = vld [vmem:[%s435 + $0x18] sm:$0xff]
        %v570 = vld [vmem:[%s444] sm:$0xff]
        %v571 = vld [vmem:[%s444 + $0x8] sm:$0xff]
        %v572 = vld [vmem:[%s444 + $0x10] sm:$0xff]
        %v573 = vld [vmem:[%s444 + $0x18] sm:$0xff]
        %s574 = sadd.s32 0, 64
        %s575 = scalar_lea.vmem %s435, %s574 [#allocation9]
        %v576 = vld [vmem:[%s575] sm:$0xff]
        %v577 = vld [vmem:[%s575 + $0x8] sm:$0xff]
        %v578 = vld [vmem:[%s575 + $0x10] sm:$0xff]
        %v579 = vld [vmem:[%s575 + $0x18] sm:$0xff]
        %v580 = vmax.f32 %v566, %v576
        %v581 = vmax.f32 %v567, %v577
        %v582 = vmax.f32 %v568, %v578
        %v583 = vmax.f32 %v569, %v579
        %s584 = scalar_lea.vmem %s444, %s574 [#allocation10]
        %v585 = vld [vmem:[%s584] sm:$0xff]
        %v586 = vld [vmem:[%s584 + $0x8] sm:$0xff]
        %v587 = vld [vmem:[%s584 + $0x10] sm:$0xff]
        %v588 = vld [vmem:[%s584 + $0x18] sm:$0xff]
        %v589 = vmax.f32 %v570, %v585
        %v590 = vmax.f32 %v571, %v586
        %v591 = vmax.f32 %v572, %v587
        %v592 = vmax.f32 %v573, %v588
        %s593 = sadd.s32 0, 128
        %s594 = scalar_lea.vmem %s435, %s593 [#allocation9]
        %v595 = vld [vmem:[%s594] sm:$0xff]
        %v596 = vld [vmem:[%s594 + $0x8] sm:$0xff]
        %v597 = vld [vmem:[%s594 + $0x10] sm:$0xff]
        %v598 = vld [vmem:[%s594 + $0x18] sm:$0xff]
        %v599 = vmax.f32 %v580, %v595
        %v600 = vmax.f32 %v581, %v596
        %v601 = vmax.f32 %v582, %v597
        %v602 = vmax.f32 %v583, %v598
        %s603 = scalar_lea.vmem %s444, %s593 [#allocation10]
        %v604 = vld [vmem:[%s603] sm:$0xff]
        %v605 = vld [vmem:[%s603 + $0x8] sm:$0xff]
        %v606 = vld [vmem:[%s603 + $0x10] sm:$0xff]
        %v607 = vld [vmem:[%s603 + $0x18] sm:$0xff]
        %v608 = vmax.f32 %v589, %v604
        %v609 = vmax.f32 %v590, %v605
        %v610 = vmax.f32 %v591, %v606
        %v611 = vmax.f32 %v592, %v607
        %s612 = sadd.s32 0, 192
        %s613 = scalar_lea.vmem %s435, %s612 [#allocation9]
        %v614 = vld [vmem:[%s613] sm:$0xff]
        %v615 = vld [vmem:[%s613 + $0x8] sm:$0xff]
        %v616 = vld [vmem:[%s613 + $0x10] sm:$0xff]
        %v617 = vld [vmem:[%s613 + $0x18] sm:$0xff]
        %v618 = vmax.f32 %v599, %v614
        %v619 = vmax.f32 %v600, %v615
        %v620 = vmax.f32 %v601, %v616
        %v621 = vmax.f32 %v602, %v617
        %s622 = scalar_lea.vmem %s444, %s612 [#allocation10]
        %v623 = vld [vmem:[%s622] sm:$0xff]
        %v624 = vld [vmem:[%s622 + $0x8] sm:$0xff]
        %v625 = vld [vmem:[%s622 + $0x10] sm:$0xff]
        %v626 = vld [vmem:[%s622 + $0x18] sm:$0xff]
        %v627 = vmax.f32 %v608, %v623
        %v628 = vmax.f32 %v609, %v624
        %v629 = vmax.f32 %v610, %v625
        %v630 = vmax.f32 %v611, %v626
        %s631 = sadd.s32 0, 256
        %s632 = scalar_lea.vmem %s435, %s631 [#allocation9]
        %v633 = vld [vmem:[%s632] sm:$0xff]
        %v634 = vld [vmem:[%s632 + $0x8] sm:$0xff]
        %v635 = vld [vmem:[%s632 + $0x10] sm:$0xff]
        %v636 = vld [vmem:[%s632 + $0x18] sm:$0xff]
        %v637 = vmax.f32 %v618, %v633
        %v638 = vmax.f32 %v619, %v634
        %v639 = vmax.f32 %v620, %v635
        %v640 = vmax.f32 %v621, %v636
        %s641 = scalar_lea.vmem %s444, %s631 [#allocation10]
        %v642 = vld [vmem:[%s641] sm:$0xff]
        %v643 = vld [vmem:[%s641 + $0x8] sm:$0xff]
        %v644 = vld [vmem:[%s641 + $0x10] sm:$0xff]
        %v645 = vld [vmem:[%s641 + $0x18] sm:$0xff]
        %v646 = vmax.f32 %v627, %v642
        %v647 = vmax.f32 %v628, %v643
        %v648 = vmax.f32 %v629, %v644
        %v649 = vmax.f32 %v630, %v645
        %s650 = sadd.s32 0, 320
        %s651 = scalar_lea.vmem %s435, %s650 [#allocation9]
        %v652 = vld [vmem:[%s651] sm:$0xff]
        %v653 = vld [vmem:[%s651 + $0x8] sm:$0xff]
        %v654 = vld [vmem:[%s651 + $0x10] sm:$0xff]
        %v655 = vld [vmem:[%s651 + $0x18] sm:$0xff]
        %v656 = vmax.f32 %v637, %v652
        %v657 = vmax.f32 %v638, %v653
        %v658 = vmax.f32 %v639, %v654
        %v659 = vmax.f32 %v640, %v655
        %s660 = scalar_lea.vmem %s444, %s650 [#allocation10]
        %v661 = vld [vmem:[%s660] sm:$0xff]
        %v662 = vld [vmem:[%s660 + $0x8] sm:$0xff]
        %v663 = vld [vmem:[%s660 + $0x10] sm:$0xff]
        %v664 = vld [vmem:[%s660 + $0x18] sm:$0xff]
        %v665 = vmax.f32 %v646, %v661
        %v666 = vmax.f32 %v647, %v662
        %v667 = vmax.f32 %v648, %v663
        %v668 = vmax.f32 %v649, %v664
        %s669 = sadd.s32 0, 384
        %s670 = scalar_lea.vmem %s435, %s669 [#allocation9]
        %v671 = vld [vmem:[%s670] sm:$0xff]
        %v672 = vld [vmem:[%s670 + $0x8] sm:$0xff]
        %v673 = vld [vmem:[%s670 + $0x10] sm:$0xff]
        %v674 = vld [vmem:[%s670 + $0x18] sm:$0xff]
        %v675 = vmax.f32 %v656, %v671
        %v676 = vmax.f32 %v657, %v672
        %v677 = vmax.f32 %v658, %v673
        %v678 = vmax.f32 %v659, %v674
        %s679 = scalar_lea.vmem %s444, %s669 [#allocation10]
        %v680 = vld [vmem:[%s679] sm:$0xff]
        %v681 = vld [vmem:[%s679 + $0x8] sm:$0xff]
        %v682 = vld [vmem:[%s679 + $0x10] sm:$0xff]
        %v683 = vld [vmem:[%s679 + $0x18] sm:$0xff]
        %v684 = vmax.f32 %v665, %v680
        %v685 = vmax.f32 %v666, %v681
        %v686 = vmax.f32 %v667, %v682
        %v687 = vmax.f32 %v668, %v683
        %s688 = sadd.s32 0, 448
        %s689 = scalar_lea.vmem %s435, %s688 [#allocation9]
        %v690 = vld [vmem:[%s689] sm:$0xff]
        %v691 = vld [vmem:[%s689 + $0x8] sm:$0xff]
        %v692 = vld [vmem:[%s689 + $0x10] sm:$0xff]
        %v693 = vld [vmem:[%s689 + $0x18] sm:$0xff]
        %v694 = vmax.f32 %v675, %v690
        %v695 = vmax.f32 %v676, %v691
        %v696 = vmax.f32 %v677, %v692
        %v697 = vmax.f32 %v678, %v693
        %s698 = scalar_lea.vmem %s444, %s688 [#allocation10]
        %v699 = vld [vmem:[%s698] sm:$0xff]
        %v700 = vld [vmem:[%s698 + $0x8] sm:$0xff]
        %v701 = vld [vmem:[%s698 + $0x10] sm:$0xff]
        %v702 = vld [vmem:[%s698 + $0x18] sm:$0xff]
        %v703 = vmax.f32 %v684, %v699
        %v704 = vmax.f32 %v685, %v700
        %v705 = vmax.f32 %v686, %v701
        %v706 = vmax.f32 %v687, %v702
        %vm707 = vcmp.eq.s32.totalorder %v558, 0
        %vm708 = vcmp.eq.s32.totalorder %v559, 0
        %vm709 = vcmp.eq.s32.totalorder %v560, 0
        %vm710 = vcmp.eq.s32.totalorder %v561, 0
        %v711 = vsub.f32 %v566, %v694
        %v712 = vsub.f32 %v567, %v695
        %v713 = vsub.f32 %v568, %v696
        %v714 = vsub.f32 %v569, %v697
        %v715 = vmul.f32 %v711, 1.442695
        %v716 = vpow.pop %v715
        %v717 = vmul.f32 %v712, 1.442695
        %v718 = vpow.pop %v717
        %v719 = vmul.f32 %v713, 1.442695
        %v720 = vpow.pop %v719
        %v721 = vmul.f32 %v714, 1.442695
        %v722 = vpow.pop %v721
        %v723 = vadd.f32 %v716, 0.0
        %v724 = vadd.f32 %v718, 0.0
        %v725 = vadd.f32 %v720, 0.0
        %v726 = vadd.f32 %v722, 0.0
        %v727 = vsub.f32 %v570, %v703
        %v728 = vsub.f32 %v571, %v704
        %v729 = vsub.f32 %v572, %v705
        %v730 = vsub.f32 %v573, %v706
        %v731 = vmul.f32 %v727, 1.442695
        %v732 = vpow.pop %v731
        %v733 = vmul.f32 %v728, 1.442695
        %v734 = vpow.pop %v733
        %v735 = vmul.f32 %v729, 1.442695
        %v736 = vpow.pop %v735
        %v737 = vmul.f32 %v730, 1.442695
        %v738 = vpow.pop %v737
        %v739 = vadd.f32 %v732, 0.0
        %v740 = vadd.f32 %v734, 0.0
        %v741 = vadd.f32 %v736, 0.0
        %v742 = vadd.f32 %v738, 0.0
        %v743 = vsel %vm707, %v566, 0.0
        %v744 = vsel %vm708, %v567, 0.0
        %v745 = vsel %vm709, %v568, 0.0
        %v746 = vsel %vm710, %v569, 0.0
        %v747 = vsel %vm707, %v570, 0.0
        %v748 = vsel %vm708, %v571, 0.0
        %v749 = vsel %vm709, %v572, 0.0
        %v750 = vsel %vm710, %v573, 0.0
        %vm751 = vcmp.eq.s32.totalorder %v558, 1
        %vm752 = vcmp.eq.s32.totalorder %v559, 1
        %vm753 = vcmp.eq.s32.totalorder %v560, 1
        %vm754 = vcmp.eq.s32.totalorder %v561, 1
        %v755 = vsub.f32 %v576, %v694
        %v756 = vsub.f32 %v577, %v695
        %v757 = vsub.f32 %v578, %v696
        %v758 = vsub.f32 %v579, %v697
        %v759 = vmul.f32 %v755, 1.442695
        %v760 = vpow.pop %v759
        %v761 = vmul.f32 %v756, 1.442695
        %v762 = vpow.pop %v761
        %v763 = vmul.f32 %v757, 1.442695
        %v764 = vpow.pop %v763
        %v765 = vmul.f32 %v758, 1.442695
        %v766 = vpow.pop %v765
        %v767 = vadd.f32 %v723, %v760
        %v768 = vadd.f32 %v724, %v762
        %v769 = vadd.f32 %v725, %v764
        %v770 = vadd.f32 %v726, %v766
        %v771 = vsub.f32 %v585, %v703
        %v772 = vsub.f32 %v586, %v704
        %v773 = vsub.f32 %v587, %v705
        %v774 = vsub.f32 %v588, %v706
        %v775 = vmul.f32 %v771, 1.442695
        %v776 = vpow.pop %v775
        %v777 = vmul.f32 %v772, 1.442695
        %v778 = vpow.pop %v777
        %v779 = vmul.f32 %v773, 1.442695
        %v780 = vpow.pop %v779
        %v781 = vmul.f32 %v774, 1.442695
        %v782 = vpow.pop %v781
        %v783 = vadd.f32 %v739, %v776
        %v784 = vadd.f32 %v740, %v778
        %v785 = vadd.f32 %v741, %v780
        %v786 = vadd.f32 %v742, %v782
        %v787 = vsel %vm751, %v576, %v743
        %v788 = vsel %vm752, %v577, %v744
        %v789 = vsel %vm753, %v578, %v745
        %v790 = vsel %vm754, %v579, %v746
        %v791 = vsel %vm751, %v585, %v747
        %v792 = vsel %vm752, %v586, %v748
        %v793 = vsel %vm753, %v587, %v749
        %v794 = vsel %vm754, %v588, %v750
        %vm795 = vcmp.eq.s32.totalorder %v558, 2
        %vm796 = vcmp.eq.s32.totalorder %v559, 2
        %vm797 = vcmp.eq.s32.totalorder %v560, 2
        %vm798 = vcmp.eq.s32.totalorder %v561, 2
        %v799 = vsub.f32 %v595, %v694
        %v800 = vsub.f32 %v596, %v695
        %v801 = vsub.f32 %v597, %v696
        %v802 = vsub.f32 %v598, %v697
        %v803 = vmul.f32 %v799, 1.442695
        %v804 = vpow.pop %v803
        %v805 = vmul.f32 %v800, 1.442695
        %v806 = vpow.pop %v805
        %v807 = vmul.f32 %v801, 1.442695
        %v808 = vpow.pop %v807
        %v809 = vmul.f32 %v802, 1.442695
        %v810 = vpow.pop %v809
        %v811 = vadd.f32 %v767, %v804
        %v812 = vadd.f32 %v768, %v806
        %v813 = vadd.f32 %v769, %v808
        %v814 = vadd.f32 %v770, %v810
        %v815 = vsub.f32 %v604, %v703
        %v816 = vsub.f32 %v605, %v704
        %v817 = vsub.f32 %v606, %v705
        %v818 = vsub.f32 %v607, %v706
        %v819 = vmul.f32 %v815, 1.442695
        %v820 = vpow.pop %v819
        %v821 = vmul.f32 %v816, 1.442695
        %v822 = vpow.pop %v821
        %v823 = vmul.f32 %v817, 1.442695
        %v824 = vpow.pop %v823
        %v825 = vmul.f32 %v818, 1.442695
        %v826 = vpow.pop %v825
        %v827 = vadd.f32 %v783, %v820
        %v828 = vadd.f32 %v784, %v822
        %v829 = vadd.f32 %v785, %v824
        %v830 = vadd.f32 %v786, %v826
        %v831 = vsel %vm795, %v595, %v787
        %v832 = vsel %vm796, %v596, %v788
        %v833 = vsel %vm797, %v597, %v789
        %v834 = vsel %vm798, %v598, %v790
        %v835 = vsel %vm795, %v604, %v791
        %v836 = vsel %vm796, %v605, %v792
        %v837 = vsel %vm797, %v606, %v793
        %v838 = vsel %vm798, %v607, %v794
        %vm839 = vcmp.eq.s32.totalorder %v558, 3
        %vm840 = vcmp.eq.s32.totalorder %v559, 3
        %vm841 = vcmp.eq.s32.totalorder %v560, 3
        %vm842 = vcmp.eq.s32.totalorder %v561, 3
        %v843 = vsub.f32 %v614, %v694
        %v844 = vsub.f32 %v615, %v695
        %v845 = vsub.f32 %v616, %v696
        %v846 = vsub.f32 %v617, %v697
        %v847 = vmul.f32 %v843, 1.442695
        %v848 = vpow.pop %v847
        %v849 = vmul.f32 %v844, 1.442695
        %v850 = vpow.pop %v849
        %v851 = vmul.f32 %v845, 1.442695
        %v852 = vpow.pop %v851
        %v853 = vmul.f32 %v846, 1.442695
        %v854 = vpow.pop %v853
        %v855 = vadd.f32 %v811, %v848
        %v856 = vadd.f32 %v812, %v850
        %v857 = vadd.f32 %v813, %v852
        %v858 = vadd.f32 %v814, %v854
        %v859 = vsub.f32 %v623, %v703
        %v860 = vsub.f32 %v624, %v704
        %v861 = vsub.f32 %v625, %v705
        %v862 = vsub.f32 %v626, %v706
        %v863 = vmul.f32 %v859, 1.442695
        %v864 = vpow.pop %v863
        %v865 = vmul.f32 %v860, 1.442695
        %v866 = vpow.pop %v865
        %v867 = vmul.f32 %v861, 1.442695
        %v868 = vpow.pop %v867
        %v869 = vmul.f32 %v862, 1.442695
        %v870 = vpow.pop %v869
        %v871 = vadd.f32 %v827, %v864
        %v872 = vadd.f32 %v828, %v866
        %v873 = vadd.f32 %v829, %v868
        %v874 = vadd.f32 %v830, %v870
        %v875 = vsel %vm839, %v614, %v831
        %v876 = vsel %vm840, %v615, %v832
        %v877 = vsel %vm841, %v616, %v833
        %v878 = vsel %vm842, %v617, %v834
        %v879 = vsel %vm839, %v623, %v835
        %v880 = vsel %vm840, %v624, %v836
        %v881 = vsel %vm841, %v625, %v837
        %v882 = vsel %vm842, %v626, %v838
        %vm883 = vcmp.eq.s32.totalorder %v558, 4
        %vm884 = vcmp.eq.s32.totalorder %v559, 4
        %vm885 = vcmp.eq.s32.totalorder %v560, 4
        %vm886 = vcmp.eq.s32.totalorder %v561, 4
        %v887 = vsub.f32 %v633, %v694
        %v888 = vsub.f32 %v634, %v695
        %v889 = vsub.f32 %v635, %v696
        %v890 = vsub.f32 %v636, %v697
        %v891 = vmul.f32 %v887, 1.442695
        %v892 = vpow.pop %v891
        %v893 = vmul.f32 %v888, 1.442695
        %v894 = vpow.pop %v893
        %v895 = vmul.f32 %v889, 1.442695
        %v896 = vpow.pop %v895
        %v897 = vmul.f32 %v890, 1.442695
        %v898 = vpow.pop %v897
        %v899 = vadd.f32 %v855, %v892
        %v900 = vadd.f32 %v856, %v894
        %v901 = vadd.f32 %v857, %v896
        %v902 = vadd.f32 %v858, %v898
        %v903 = vsub.f32 %v642, %v703
        %v904 = vsub.f32 %v643, %v704
        %v905 = vsub.f32 %v644, %v705
        %v906 = vsub.f32 %v645, %v706
        %v907 = vmul.f32 %v903, 1.442695
        %v908 = vpow.pop %v907
        %v909 = vmul.f32 %v904, 1.442695
        %v910 = vpow.pop %v909
        %v911 = vmul.f32 %v905, 1.442695
        %v912 = vpow.pop %v911
        %v913 = vmul.f32 %v906, 1.442695
        %v914 = vpow.pop %v913
        %v915 = vadd.f32 %v871, %v908
        %v916 = vadd.f32 %v872, %v910
        %v917 = vadd.f32 %v873, %v912
        %v918 = vadd.f32 %v874, %v914
        %v919 = vsel %vm883, %v633, %v875
        %v920 = vsel %vm884, %v634, %v876
        %v921 = vsel %vm885, %v635, %v877
        %v922 = vsel %vm886, %v636, %v878
        %v923 = vsel %vm883, %v642, %v879
        %v924 = vsel %vm884, %v643, %v880
        %v925 = vsel %vm885, %v644, %v881
        %v926 = vsel %vm886, %v645, %v882
        %vm927 = vcmp.eq.s32.totalorder %v558, 5
        %vm928 = vcmp.eq.s32.totalorder %v559, 5
        %vm929 = vcmp.eq.s32.totalorder %v560, 5
        %vm930 = vcmp.eq.s32.totalorder %v561, 5
        %v931 = vsub.f32 %v652, %v694
        %v932 = vsub.f32 %v653, %v695
        %v933 = vsub.f32 %v654, %v696
        %v934 = vsub.f32 %v655, %v697
        %v935 = vmul.f32 %v931, 1.442695
        %v936 = vpow.pop %v935
        %v937 = vmul.f32 %v932, 1.442695
        %v938 = vpow.pop %v937
        %v939 = vmul.f32 %v933, 1.442695
        %v940 = vpow.pop %v939
        %v941 = vmul.f32 %v934, 1.442695
        %v942 = vpow.pop %v941
        %v943 = vadd.f32 %v899, %v936
        %v944 = vadd.f32 %v900, %v938
        %v945 = vadd.f32 %v901, %v940
        %v946 = vadd.f32 %v902, %v942
        %v947 = vsub.f32 %v661, %v703
        %v948 = vsub.f32 %v662, %v704
        %v949 = vsub.f32 %v663, %v705
        %v950 = vsub.f32 %v664, %v706
        %v951 = vmul.f32 %v947, 1.442695
        %v952 = vpow.pop %v951
        %v953 = vmul.f32 %v948, 1.442695
        %v954 = vpow.pop %v953
        %v955 = vmul.f32 %v949, 1.442695
        %v956 = vpow.pop %v955
        %v957 = vmul.f32 %v950, 1.442695
        %v958 = vpow.pop %v957
        %v959 = vadd.f32 %v915, %v952
        %v960 = vadd.f32 %v916, %v954
        %v961 = vadd.f32 %v917, %v956
        %v962 = vadd.f32 %v918, %v958
        %v963 = vsel %vm927, %v652, %v919
        %v964 = vsel %vm928, %v653, %v920
        %v965 = vsel %vm929, %v654, %v921
        %v966 = vsel %vm930, %v655, %v922
        %v967 = vsel %vm927, %v661, %v923
        %v968 = vsel %vm928, %v662, %v924
        %v969 = vsel %vm929, %v663, %v925
        %v970 = vsel %vm930, %v664, %v926
        %vm971 = vcmp.eq.s32.totalorder %v558, 6
        %vm972 = vcmp.eq.s32.totalorder %v559, 6
        %vm973 = vcmp.eq.s32.totalorder %v560, 6
        %vm974 = vcmp.eq.s32.totalorder %v561, 6
        %v975 = vsub.f32 %v671, %v694
        %v976 = vsub.f32 %v672, %v695
        %v977 = vsub.f32 %v673, %v696
        %v978 = vsub.f32 %v674, %v697
        %v979 = vmul.f32 %v975, 1.442695
        %v980 = vpow.pop %v979
        %v981 = vmul.f32 %v976, 1.442695
        %v982 = vpow.pop %v981
        %v983 = vmul.f32 %v977, 1.442695
        %v984 = vpow.pop %v983
        %v985 = vmul.f32 %v978, 1.442695
        %v986 = vpow.pop %v985
        %v987 = vadd.f32 %v943, %v980
        %v988 = vadd.f32 %v944, %v982
        %v989 = vadd.f32 %v945, %v984
        %v990 = vadd.f32 %v946, %v986
        %v991 = vsub.f32 %v680, %v703
        %v992 = vsub.f32 %v681, %v704
        %v993 = vsub.f32 %v682, %v705
        %v994 = vsub.f32 %v683, %v706
        %v995 = vmul.f32 %v991, 1.442695
        %v996 = vpow.pop %v995
        %v997 = vmul.f32 %v992, 1.442695
        %v998 = vpow.pop %v997
        %v999 = vmul.f32 %v993, 1.442695
        %v1000 = vpow.pop %v999
        %v1001 = vmul.f32 %v994, 1.442695
        %v1002 = vpow.pop %v1001
        %v1003 = vadd.f32 %v959, %v996
        %v1004 = vadd.f32 %v960, %v998
        %v1005 = vadd.f32 %v961, %v1000
        %v1006 = vadd.f32 %v962, %v1002
        %v1007 = vsel %vm971, %v671, %v963
        %v1008 = vsel %vm972, %v672, %v964
        %v1009 = vsel %vm973, %v673, %v965
        %v1010 = vsel %vm974, %v674, %v966
        %v1011 = vsel %vm971, %v680, %v967
        %v1012 = vsel %vm972, %v681, %v968
        %v1013 = vsel %vm973, %v682, %v969
        %v1014 = vsel %vm974, %v683, %v970
        %vm1015 = vcmp.eq.s32.totalorder %v558, 7
        %vm1016 = vcmp.eq.s32.totalorder %v559, 7
        %vm1017 = vcmp.eq.s32.totalorder %v560, 7
        %vm1018 = vcmp.eq.s32.totalorder %v561, 7
        %v1019 = vsub.f32 %v690, %v694
        %v1020 = vsub.f32 %v691, %v695
        %v1021 = vsub.f32 %v692, %v696
        %v1022 = vsub.f32 %v693, %v697
        %v1023 = vmul.f32 %v1019, 1.442695
        %v1024 = vpow.pop %v1023
        %v1025 = vmul.f32 %v1020, 1.442695
        %v1026 = vpow.pop %v1025
        %v1027 = vmul.f32 %v1021, 1.442695
        %v1028 = vpow.pop %v1027
        %v1029 = vmul.f32 %v1022, 1.442695
        %v1030 = vpow.pop %v1029
        %v1031 = vadd.f32 %v987, %v1024
        %v1032 = vadd.f32 %v988, %v1026
        %v1033 = vadd.f32 %v989, %v1028
        %v1034 = vadd.f32 %v990, %v1030
        %v1035 = vsub.f32 %v699, %v703
        %v1036 = vsub.f32 %v700, %v704
        %v1037 = vsub.f32 %v701, %v705
        %v1038 = vsub.f32 %v702, %v706
        %v1039 = vmul.f32 %v1035, 1.442695
        %v1040 = vpow.pop %v1039
        %v1041 = vmul.f32 %v1036, 1.442695
        %v1042 = vpow.pop %v1041
        %v1043 = vmul.f32 %v1037, 1.442695
        %v1044 = vpow.pop %v1043
        %v1045 = vmul.f32 %v1038, 1.442695
        %v1046 = vpow.pop %v1045
        %v1047 = vadd.f32 %v1003, %v1040
        %v1048 = vadd.f32 %v1004, %v1042
        %v1049 = vadd.f32 %v1005, %v1044
        %v1050 = vadd.f32 %v1006, %v1046
        %v1051 = vsel %vm1015, %v690, %v1007
        %v1052 = vsel %vm1016, %v691, %v1008
        %v1053 = vsel %vm1017, %v692, %v1009
        %v1054 = vsel %vm1018, %v693, %v1010
        %v1055 = vsel %vm1015, %v699, %v1011
        %v1056 = vsel %vm1016, %v700, %v1012
        %v1057 = vsel %vm1017, %v701, %v1013
        %v1058 = vsel %vm1018, %v702, %v1014
        %v1059 = vlog2.pop %v1031
        %v1060 = vmul.f32 %v1059, 0.6931472
        %v1061 = vlog2.pop %v1032
        %v1062 = vmul.f32 %v1061, 0.6931472
        %v1063 = vlog2.pop %v1033
        %v1064 = vmul.f32 %v1063, 0.6931472
        %v1065 = vlog2.pop %v1034
        %v1066 = vmul.f32 %v1065, 0.6931472
        %v1067 = vadd.f32 %v1060, %v694
        %v1068 = vadd.f32 %v1062, %v695
        %v1069 = vadd.f32 %v1064, %v696
        %v1070 = vadd.f32 %v1066, %v697
        %v1071 = vsub.f32 %v1067, %v1051
        %v1072 = vsub.f32 %v1068, %v1052
        %v1073 = vsub.f32 %v1069, %v1053
        %v1074 = vsub.f32 %v1070, %v1054
        %v1075 = vsel %vm562, 0.0, %v1071
        %v1076 = vsel %vm563, 0.0, %v1072
        %v1077 = vsel %vm564, 0.0, %v1073
        %v1078 = vsel %vm565, 0.0, %v1074
        %v1079 = vlog2.pop %v1047
        %v1080 = vmul.f32 %v1079, 0.6931472
        %v1081 = vlog2.pop %v1048
        %v1082 = vmul.f32 %v1081, 0.6931472
        %v1083 = vlog2.pop %v1049
        %v1084 = vmul.f32 %v1083, 0.6931472
        %v1085 = vlog2.pop %v1050
        %v1086 = vmul.f32 %v1085, 0.6931472
        %v1087 = vadd.f32 %v1080, %v703
        %v1088 = vadd.f32 %v1082, %v704
        %v1089 = vadd.f32 %v1084, %v705
        %v1090 = vadd.f32 %v1086, %v706
        %v1091 = vsub.f32 %v1087, %v1055
        %v1092 = vsub.f32 %v1088, %v1056
        %v1093 = vsub.f32 %v1089, %v1057
        %v1094 = vsub.f32 %v1090, %v1058
        %v1095 = vsel %vm562, 0.0, %v1091
        %v1096 = vsel %vm563, 0.0, %v1092
        %v1097 = vsel %vm564, 0.0, %v1093
        %v1098 = vsel %vm565, 0.0, %v1094
        %v1099 = vstv %s526
        %v1100 = vmul.f32 %v1099, %v1075
        %v1101 = vmul.f32 %v1099, %v1076
        %v1102 = vmul.f32 %v1099, %v1077
        %v1103 = vmul.f32 %v1099, %v1078
        %v1104 = vstv %s523
        %v1105 = vadd.f32 %v1100, %v1104
        %v1106 = vadd.f32 %v1101, %v1104
        %v1107 = vadd.f32 %v1102, %v1104
        %v1108 = vadd.f32 %v1103, %v1104
        %1109 = vst [vmem:[%s506] sm:$0xff] %v1105
        %1110 = vst [vmem:[%s506 + $0x8] sm:$0xff] %v1106
        %1111 = vst [vmem:[%s506 + $0x10] sm:$0xff] %v1107
        %1112 = vst [vmem:[%s506 + $0x18] sm:$0xff] %v1108
        %v1113 = vstv %s527
        %v1114 = vmul.f32 %v1113, %v1095
        %v1115 = vmul.f32 %v1113, %v1096
        %v1116 = vmul.f32 %v1113, %v1097
        %v1117 = vmul.f32 %v1113, %v1098
        %v1118 = vstv %s524
        %v1119 = vadd.f32 %v1114, %v1118
        %v1120 = vadd.f32 %v1115, %v1118
        %v1121 = vadd.f32 %v1116, %v1118
        %v1122 = vadd.f32 %v1117, %v1118
        %1123 = vst [vmem:[%s513] sm:$0xff] %v1119
        %1124 = vst [vmem:[%s513 + $0x8] sm:$0xff] %v1120
        %1125 = vst [vmem:[%s513 + $0x10] sm:$0xff] %v1121
        %1126 = vst [vmem:[%s513 + $0x18] sm:$0xff] %v1122
        %s1127 = scalar_lea.vmem %s417, 32 [#allocation4]
        %v1128 = vld [vmem:[%s1127] sm:$0xff]
        %v1129 = vld [vmem:[%s1127 + $0x8] sm:$0xff]
        %v1130 = vld [vmem:[%s1127 + $0x10] sm:$0xff]
        %v1131 = vld [vmem:[%s1127 + $0x18] sm:$0xff]
        %s1132 = scalar_lea.vmem %s426, 32 [#allocation7]
        %v1133 = vld [vmem:[%s1132] sm:$0xff]
        %v1134 = vld [vmem:[%s1132 + $0x8] sm:$0xff]
        %v1135 = vld [vmem:[%s1132 + $0x10] sm:$0xff]
        %v1136 = vld [vmem:[%s1132 + $0x18] sm:$0xff]
        %v1137 = vsub.f32 %v1128, %v1133
        %v1138 = vsub.f32 %v1129, %v1134
        %v1139 = vsub.f32 %v1130, %v1135
        %v1140 = vsub.f32 %v1131, %v1136
        %v1141 = vand.u32 2147483647, %v1137
        %v1142 = vand.u32 2147483647, %v1138
        %v1143 = vand.u32 2147483647, %v1139
        %v1144 = vand.u32 2147483647, %v1140
        %v1145 = vmul.f32 %v544, %v1141
        %v1146 = vmul.f32 %v544, %v1142
        %v1147 = vmul.f32 %v544, %v1143
        %v1148 = vmul.f32 %v544, %v1144
        %v1149 = vadd.f32 %v1145, %v549
        %v1150 = vadd.f32 %v1146, %v549
        %v1151 = vadd.f32 %v1147, %v549
        %v1152 = vadd.f32 %v1148, %v549
        %s1153 = scalar_lea.vmem %s499, 32 [#allocation13]
        %1154 = vst [vmem:[%s1153] sm:$0xff] %v1149
        %1155 = vst [vmem:[%s1153 + $0x8] sm:$0xff] %v1150
        %1156 = vst [vmem:[%s1153 + $0x10] sm:$0xff] %v1151
        %1157 = vst [vmem:[%s1153 + $0x18] sm:$0xff] %v1152
        %s1158 = scalar_lea.vmem %s453, 32 [#allocation12]
        %v1159 = vld [vmem:[%s1158] sm:$0xff]
        %v1160 = vld [vmem:[%s1158 + $0x8] sm:$0xff]
        %v1161 = vld [vmem:[%s1158 + $0x10] sm:$0xff]
        %v1162 = vld [vmem:[%s1158 + $0x18] sm:$0xff]
        %vm1163 = vcmp.eq.s32.totalorder %v1159, 19
        %vm1164 = vcmp.eq.s32.totalorder %v1160, 19
        %vm1165 = vcmp.eq.s32.totalorder %v1161, 19
        %vm1166 = vcmp.eq.s32.totalorder %v1162, 19
        %s1167 = scalar_lea.vmem %s435, 32 [#allocation9]
        %v1168 = vld [vmem:[%s1167] sm:$0xff]
        %v1169 = vld [vmem:[%s1167 + $0x8] sm:$0xff]
        %v1170 = vld [vmem:[%s1167 + $0x10] sm:$0xff]
        %v1171 = vld [vmem:[%s1167 + $0x18] sm:$0xff]
        %s1172 = scalar_lea.vmem %s444, 32 [#allocation10]
        %v1173 = vld [vmem:[%s1172] sm:$0xff]
        %v1174 = vld [vmem:[%s1172 + $0x8] sm:$0xff]
        %v1175 = vld [vmem:[%s1172 + $0x10] sm:$0xff]
        %v1176 = vld [vmem:[%s1172 + $0x18] sm:$0xff]
        %s1177 = sadd.s32 32, 64
        %s1178 = scalar_lea.vmem %s435, %s1177 [#allocation9]
        %v1179 = vld [vmem:[%s1178] sm:$0xff]
        %v1180 = vld [vmem:[%s1178 + $0x8] sm:$0xff]
        %v1181 = vld [vmem:[%s1178 + $0x10] sm:$0xff]
        %v1182 = vld [vmem:[%s1178 + $0x18] sm:$0xff]
        %v1183 = vmax.f32 %v1168, %v1179
        %v1184 = vmax.f32 %v1169, %v1180
        %v1185 = vmax.f32 %v1170, %v1181
        %v1186 = vmax.f32 %v1171, %v1182
        %s1187 = scalar_lea.vmem %s444, %s1177 [#allocation10]
        %v1188 = vld [vmem:[%s1187] sm:$0xff]
        %v1189 = vld [vmem:[%s1187 + $0x8] sm:$0xff]
        %v1190 = vld [vmem:[%s1187 + $0x10] sm:$0xff]
        %v1191 = vld [vmem:[%s1187 + $0x18] sm:$0xff]
        %v1192 = vmax.f32 %v1173, %v1188
        %v1193 = vmax.f32 %v1174, %v1189
        %v1194 = vmax.f32 %v1175, %v1190
        %v1195 = vmax.f32 %v1176, %v1191
        %s1196 = sadd.s32 32, 128
        %s1197 = scalar_lea.vmem %s435, %s1196 [#allocation9]
        %v1198 = vld [vmem:[%s1197] sm:$0xff]
        %v1199 = vld [vmem:[%s1197 + $0x8] sm:$0xff]
        %v1200 = vld [vmem:[%s1197 + $0x10] sm:$0xff]
        %v1201 = vld [vmem:[%s1197 + $0x18] sm:$0xff]
        %v1202 = vmax.f32 %v1183, %v1198
        %v1203 = vmax.f32 %v1184, %v1199
        %v1204 = vmax.f32 %v1185, %v1200
        %v1205 = vmax.f32 %v1186, %v1201
        %s1206 = scalar_lea.vmem %s444, %s1196 [#allocation10]
        %v1207 = vld [vmem:[%s1206] sm:$0xff]
        %v1208 = vld [vmem:[%s1206 + $0x8] sm:$0xff]
        %v1209 = vld [vmem:[%s1206 + $0x10] sm:$0xff]
        %v1210 = vld [vmem:[%s1206 + $0x18] sm:$0xff]
        %v1211 = vmax.f32 %v1192, %v1207
        %v1212 = vmax.f32 %v1193, %v1208
        %v1213 = vmax.f32 %v1194, %v1209
        %v1214 = vmax.f32 %v1195, %v1210
        %s1215 = sadd.s32 32, 192
        %s1216 = scalar_lea.vmem %s435, %s1215 [#allocation9]
        %v1217 = vld [vmem:[%s1216] sm:$0xff]
        %v1218 = vld [vmem:[%s1216 + $0x8] sm:$0xff]
        %v1219 = vld [vmem:[%s1216 + $0x10] sm:$0xff]
        %v1220 = vld [vmem:[%s1216 + $0x18] sm:$0xff]
        %v1221 = vmax.f32 %v1202, %v1217
        %v1222 = vmax.f32 %v1203, %v1218
        %v1223 = vmax.f32 %v1204, %v1219
        %v1224 = vmax.f32 %v1205, %v1220
        %s1225 = scalar_lea.vmem %s444, %s1215 [#allocation10]
        %v1226 = vld [vmem:[%s1225] sm:$0xff]
        %v1227 = vld [vmem:[%s1225 + $0x8] sm:$0xff]
        %v1228 = vld [vmem:[%s1225 + $0x10] sm:$0xff]
        %v1229 = vld [vmem:[%s1225 + $0x18] sm:$0xff]
        %v1230 = vmax.f32 %v1211, %v1226
        %v1231 = vmax.f32 %v1212, %v1227
        %v1232 = vmax.f32 %v1213, %v1228
        %v1233 = vmax.f32 %v1214, %v1229
        %s1234 = sadd.s32 32, 256
        %s1235 = scalar_lea.vmem %s435, %s1234 [#allocation9]
        %v1236 = vld [vmem:[%s1235] sm:$0xff]
        %v1237 = vld [vmem:[%s1235 + $0x8] sm:$0xff]
        %v1238 = vld [vmem:[%s1235 + $0x10] sm:$0xff]
        %v1239 = vld [vmem:[%s1235 + $0x18] sm:$0xff]
        %v1240 = vmax.f32 %v1221, %v1236
        %v1241 = vmax.f32 %v1222, %v1237
        %v1242 = vmax.f32 %v1223, %v1238
        %v1243 = vmax.f32 %v1224, %v1239
        %s1244 = scalar_lea.vmem %s444, %s1234 [#allocation10]
        %v1245 = vld [vmem:[%s1244] sm:$0xff]
        %v1246 = vld [vmem:[%s1244 + $0x8] sm:$0xff]
        %v1247 = vld [vmem:[%s1244 + $0x10] sm:$0xff]
        %v1248 = vld [vmem:[%s1244 + $0x18] sm:$0xff]
        %v1249 = vmax.f32 %v1230, %v1245
        %v1250 = vmax.f32 %v1231, %v1246
        %v1251 = vmax.f32 %v1232, %v1247
        %v1252 = vmax.f32 %v1233, %v1248
        %s1253 = sadd.s32 32, 320
        %s1254 = scalar_lea.vmem %s435, %s1253 [#allocation9]
        %v1255 = vld [vmem:[%s1254] sm:$0xff]
        %v1256 = vld [vmem:[%s1254 + $0x8] sm:$0xff]
        %v1257 = vld [vmem:[%s1254 + $0x10] sm:$0xff]
        %v1258 = vld [vmem:[%s1254 + $0x18] sm:$0xff]
        %v1259 = vmax.f32 %v1240, %v1255
        %v1260 = vmax.f32 %v1241, %v1256
        %v1261 = vmax.f32 %v1242, %v1257
        %v1262 = vmax.f32 %v1243, %v1258
        %s1263 = scalar_lea.vmem %s444, %s1253 [#allocation10]
        %v1264 = vld [vmem:[%s1263] sm:$0xff]
        %v1265 = vld [vmem:[%s1263 + $0x8] sm:$0xff]
        %v1266 = vld [vmem:[%s1263 + $0x10] sm:$0xff]
        %v1267 = vld [vmem:[%s1263 + $0x18] sm:$0xff]
        %v1268 = vmax.f32 %v1249, %v1264
        %v1269 = vmax.f32 %v1250, %v1265
        %v1270 = vmax.f32 %v1251, %v1266
        %v1271 = vmax.f32 %v1252, %v1267
        %s1272 = sadd.s32 32, 384
        %s1273 = scalar_lea.vmem %s435, %s1272 [#allocation9]
        %v1274 = vld [vmem:[%s1273] sm:$0xff]
        %v1275 = vld [vmem:[%s1273 + $0x8] sm:$0xff]
        %v1276 = vld [vmem:[%s1273 + $0x10] sm:$0xff]
        %v1277 = vld [vmem:[%s1273 + $0x18] sm:$0xff]
        %v1278 = vmax.f32 %v1259, %v1274
        %v1279 = vmax.f32 %v1260, %v1275
        %v1280 = vmax.f32 %v1261, %v1276
        %v1281 = vmax.f32 %v1262, %v1277
        %s1282 = scalar_lea.vmem %s444, %s1272 [#allocation10]
        %v1283 = vld [vmem:[%s1282] sm:$0xff]
        %v1284 = vld [vmem:[%s1282 + $0x8] sm:$0xff]
        %v1285 = vld [vmem:[%s1282 + $0x10] sm:$0xff]
        %v1286 = vld [vmem:[%s1282 + $0x18] sm:$0xff]
        %v1287 = vmax.f32 %v1268, %v1283
        %v1288 = vmax.f32 %v1269, %v1284
        %v1289 = vmax.f32 %v1270, %v1285
        %v1290 = vmax.f32 %v1271, %v1286
        %s1291 = sadd.s32 32, 448
        %s1292 = scalar_lea.vmem %s435, %s1291 [#allocation9]
        %v1293 = vld [vmem:[%s1292] sm:$0xff]
        %v1294 = vld [vmem:[%s1292 + $0x8] sm:$0xff]
        %v1295 = vld [vmem:[%s1292 + $0x10] sm:$0xff]
        %v1296 = vld [vmem:[%s1292 + $0x18] sm:$0xff]
        %v1297 = vmax.f32 %v1278, %v1293
        %v1298 = vmax.f32 %v1279, %v1294
        %v1299 = vmax.f32 %v1280, %v1295
        %v1300 = vmax.f32 %v1281, %v1296
        %s1301 = scalar_lea.vmem %s444, %s1291 [#allocation10]
        %v1302 = vld [vmem:[%s1301] sm:$0xff]
        %v1303 = vld [vmem:[%s1301 + $0x8] sm:$0xff]
        %v1304 = vld [vmem:[%s1301 + $0x10] sm:$0xff]
        %v1305 = vld [vmem:[%s1301 + $0x18] sm:$0xff]
        %v1306 = vmax.f32 %v1287, %v1302
        %v1307 = vmax.f32 %v1288, %v1303
        %v1308 = vmax.f32 %v1289, %v1304
        %v1309 = vmax.f32 %v1290, %v1305
        %vm1310 = vcmp.eq.s32.totalorder %v1159, 0
        %vm1311 = vcmp.eq.s32.totalorder %v1160, 0
        %vm1312 = vcmp.eq.s32.totalorder %v1161, 0
        %vm1313 = vcmp.eq.s32.totalorder %v1162, 0
        %v1314 = vsub.f32 %v1168, %v1297
        %v1315 = vsub.f32 %v1169, %v1298
        %v1316 = vsub.f32 %v1170, %v1299
        %v1317 = vsub.f32 %v1171, %v1300
        %v1318 = vmul.f32 %v1314, 1.442695
        %v1319 = vpow.pop %v1318
        %v1320 = vmul.f32 %v1315, 1.442695
        %v1321 = vpow.pop %v1320
        %v1322 = vmul.f32 %v1316, 1.442695
        %v1323 = vpow.pop %v1322
        %v1324 = vmul.f32 %v1317, 1.442695
        %v1325 = vpow.pop %v1324
        %v1326 = vadd.f32 %v1319, 0.0
        %v1327 = vadd.f32 %v1321, 0.0
        %v1328 = vadd.f32 %v1323, 0.0
        %v1329 = vadd.f32 %v1325, 0.0
        %v1330 = vsub.f32 %v1173, %v1306
        %v1331 = vsub.f32 %v1174, %v1307
        %v1332 = vsub.f32 %v1175, %v1308
        %v1333 = vsub.f32 %v1176, %v1309
        %v1334 = vmul.f32 %v1330, 1.442695
        %v1335 = vpow.pop %v1334
        %v1336 = vmul.f32 %v1331, 1.442695
        %v1337 = vpow.pop %v1336
        %v1338 = vmul.f32 %v1332, 1.442695
        %v1339 = vpow.pop %v1338
        %v1340 = vmul.f32 %v1333, 1.442695
        %v1341 = vpow.pop %v1340
        %v1342 = vadd.f32 %v1335, 0.0
        %v1343 = vadd.f32 %v1337, 0.0
        %v1344 = vadd.f32 %v1339, 0.0
        %v1345 = vadd.f32 %v1341, 0.0
        %v1346 = vsel %vm1310, %v1168, 0.0
        %v1347 = vsel %vm1311, %v1169, 0.0
        %v1348 = vsel %vm1312, %v1170, 0.0
        %v1349 = vsel %vm1313, %v1171, 0.0
        %v1350 = vsel %vm1310, %v1173, 0.0
        %v1351 = vsel %vm1311, %v1174, 0.0
        %v1352 = vsel %vm1312, %v1175, 0.0
        %v1353 = vsel %vm1313, %v1176, 0.0
        %vm1354 = vcmp.eq.s32.totalorder %v1159, 1
        %vm1355 = vcmp.eq.s32.totalorder %v1160, 1
        %vm1356 = vcmp.eq.s32.totalorder %v1161, 1
        %vm1357 = vcmp.eq.s32.totalorder %v1162, 1
        %v1358 = vsub.f32 %v1179, %v1297
        %v1359 = vsub.f32 %v1180, %v1298
        %v1360 = vsub.f32 %v1181, %v1299
        %v1361 = vsub.f32 %v1182, %v1300
        %v1362 = vmul.f32 %v1358, 1.442695
        %v1363 = vpow.pop %v1362
        %v1364 = vmul.f32 %v1359, 1.442695
        %v1365 = vpow.pop %v1364
        %v1366 = vmul.f32 %v1360, 1.442695
        %v1367 = vpow.pop %v1366
        %v1368 = vmul.f32 %v1361, 1.442695
        %v1369 = vpow.pop %v1368
        %v1370 = vadd.f32 %v1326, %v1363
        %v1371 = vadd.f32 %v1327, %v1365
        %v1372 = vadd.f32 %v1328, %v1367
        %v1373 = vadd.f32 %v1329, %v1369
        %v1374 = vsub.f32 %v1188, %v1306
        %v1375 = vsub.f32 %v1189, %v1307
        %v1376 = vsub.f32 %v1190, %v1308
        %v1377 = vsub.f32 %v1191, %v1309
        %v1378 = vmul.f32 %v1374, 1.442695
        %v1379 = vpow.pop %v1378
        %v1380 = vmul.f32 %v1375, 1.442695
        %v1381 = vpow.pop %v1380
        %v1382 = vmul.f32 %v1376, 1.442695
        %v1383 = vpow.pop %v1382
        %v1384 = vmul.f32 %v1377, 1.442695
        %v1385 = vpow.pop %v1384
        %v1386 = vadd.f32 %v1342, %v1379
        %v1387 = vadd.f32 %v1343, %v1381
        %v1388 = vadd.f32 %v1344, %v1383
        %v1389 = vadd.f32 %v1345, %v1385
        %v1390 = vsel %vm1354, %v1179, %v1346
        %v1391 = vsel %vm1355, %v1180, %v1347
        %v1392 = vsel %vm1356, %v1181, %v1348
        %v1393 = vsel %vm1357, %v1182, %v1349
        %v1394 = vsel %vm1354, %v1188, %v1350
        %v1395 = vsel %vm1355, %v1189, %v1351
        %v1396 = vsel %vm1356, %v1190, %v1352
        %v1397 = vsel %vm1357, %v1191, %v1353
        %vm1398 = vcmp.eq.s32.totalorder %v1159, 2
        %vm1399 = vcmp.eq.s32.totalorder %v1160, 2
        %vm1400 = vcmp.eq.s32.totalorder %v1161, 2
        %vm1401 = vcmp.eq.s32.totalorder %v1162, 2
        %v1402 = vsub.f32 %v1198, %v1297
        %v1403 = vsub.f32 %v1199, %v1298
        %v1404 = vsub.f32 %v1200, %v1299
        %v1405 = vsub.f32 %v1201, %v1300
        %v1406 = vmul.f32 %v1402, 1.442695
        %v1407 = vpow.pop %v1406
        %v1408 = vmul.f32 %v1403, 1.442695
        %v1409 = vpow.pop %v1408
        %v1410 = vmul.f32 %v1404, 1.442695
        %v1411 = vpow.pop %v1410
        %v1412 = vmul.f32 %v1405, 1.442695
        %v1413 = vpow.pop %v1412
        %v1414 = vadd.f32 %v1370, %v1407
        %v1415 = vadd.f32 %v1371, %v1409
        %v1416 = vadd.f32 %v1372, %v1411
        %v1417 = vadd.f32 %v1373, %v1413
        %v1418 = vsub.f32 %v1207, %v1306
        %v1419 = vsub.f32 %v1208, %v1307
        %v1420 = vsub.f32 %v1209, %v1308
        %v1421 = vsub.f32 %v1210, %v1309
        %v1422 = vmul.f32 %v1418, 1.442695
        %v1423 = vpow.pop %v1422
        %v1424 = vmul.f32 %v1419, 1.442695
        %v1425 = vpow.pop %v1424
        %v1426 = vmul.f32 %v1420, 1.442695
        %v1427 = vpow.pop %v1426
        %v1428 = vmul.f32 %v1421, 1.442695
        %v1429 = vpow.pop %v1428
        %v1430 = vadd.f32 %v1386, %v1423
        %v1431 = vadd.f32 %v1387, %v1425
        %v1432 = vadd.f32 %v1388, %v1427
        %v1433 = vadd.f32 %v1389, %v1429
        %v1434 = vsel %vm1398, %v1198, %v1390
        %v1435 = vsel %vm1399, %v1199, %v1391
        %v1436 = vsel %vm1400, %v1200, %v1392
        %v1437 = vsel %vm1401, %v1201, %v1393
        %v1438 = vsel %vm1398, %v1207, %v1394
        %v1439 = vsel %vm1399, %v1208, %v1395
        %v1440 = vsel %vm1400, %v1209, %v1396
        %v1441 = vsel %vm1401, %v1210, %v1397
        %vm1442 = vcmp.eq.s32.totalorder %v1159, 3
        %vm1443 = vcmp.eq.s32.totalorder %v1160, 3
        %vm1444 = vcmp.eq.s32.totalorder %v1161, 3
        %vm1445 = vcmp.eq.s32.totalorder %v1162, 3
        %v1446 = vsub.f32 %v1217, %v1297
        %v1447 = vsub.f32 %v1218, %v1298
        %v1448 = vsub.f32 %v1219, %v1299
        %v1449 = vsub.f32 %v1220, %v1300
        %v1450 = vmul.f32 %v1446, 1.442695
        %v1451 = vpow.pop %v1450
        %v1452 = vmul.f32 %v1447, 1.442695
        %v1453 = vpow.pop %v1452
        %v1454 = vmul.f32 %v1448, 1.442695
        %v1455 = vpow.pop %v1454
        %v1456 = vmul.f32 %v1449, 1.442695
        %v1457 = vpow.pop %v1456
        %v1458 = vadd.f32 %v1414, %v1451
        %v1459 = vadd.f32 %v1415, %v1453
        %v1460 = vadd.f32 %v1416, %v1455
        %v1461 = vadd.f32 %v1417, %v1457
        %v1462 = vsub.f32 %v1226, %v1306
        %v1463 = vsub.f32 %v1227, %v1307
        %v1464 = vsub.f32 %v1228, %v1308
        %v1465 = vsub.f32 %v1229, %v1309
        %v1466 = vmul.f32 %v1462, 1.442695
        %v1467 = vpow.pop %v1466
        %v1468 = vmul.f32 %v1463, 1.442695
        %v1469 = vpow.pop %v1468
        %v1470 = vmul.f32 %v1464, 1.442695
        %v1471 = vpow.pop %v1470
        %v1472 = vmul.f32 %v1465, 1.442695
        %v1473 = vpow.pop %v1472
        %v1474 = vadd.f32 %v1430, %v1467
        %v1475 = vadd.f32 %v1431, %v1469
        %v1476 = vadd.f32 %v1432, %v1471
        %v1477 = vadd.f32 %v1433, %v1473
        %v1478 = vsel %vm1442, %v1217, %v1434
        %v1479 = vsel %vm1443, %v1218, %v1435
        %v1480 = vsel %vm1444, %v1219, %v1436
        %v1481 = vsel %vm1445, %v1220, %v1437
        %v1482 = vsel %vm1442, %v1226, %v1438
        %v1483 = vsel %vm1443, %v1227, %v1439
        %v1484 = vsel %vm1444, %v1228, %v1440
        %v1485 = vsel %vm1445, %v1229, %v1441
        %vm1486 = vcmp.eq.s32.totalorder %v1159, 4
        %vm1487 = vcmp.eq.s32.totalorder %v1160, 4
        %vm1488 = vcmp.eq.s32.totalorder %v1161, 4
        %vm1489 = vcmp.eq.s32.totalorder %v1162, 4
        %v1490 = vsub.f32 %v1236, %v1297
        %v1491 = vsub.f32 %v1237, %v1298
        %v1492 = vsub.f32 %v1238, %v1299
        %v1493 = vsub.f32 %v1239, %v1300
        %v1494 = vmul.f32 %v1490, 1.442695
        %v1495 = vpow.pop %v1494
        %v1496 = vmul.f32 %v1491, 1.442695
        %v1497 = vpow.pop %v1496
        %v1498 = vmul.f32 %v1492, 1.442695
        %v1499 = vpow.pop %v1498
        %v1500 = vmul.f32 %v1493, 1.442695
        %v1501 = vpow.pop %v1500
        %v1502 = vadd.f32 %v1458, %v1495
        %v1503 = vadd.f32 %v1459, %v1497
        %v1504 = vadd.f32 %v1460, %v1499
        %v1505 = vadd.f32 %v1461, %v1501
        %v1506 = vsub.f32 %v1245, %v1306
        %v1507 = vsub.f32 %v1246, %v1307
        %v1508 = vsub.f32 %v1247, %v1308
        %v1509 = vsub.f32 %v1248, %v1309
        %v1510 = vmul.f32 %v1506, 1.442695
        %v1511 = vpow.pop %v1510
        %v1512 = vmul.f32 %v1507, 1.442695
        %v1513 = vpow.pop %v1512
        %v1514 = vmul.f32 %v1508, 1.442695
        %v1515 = vpow.pop %v1514
        %v1516 = vmul.f32 %v1509, 1.442695
        %v1517 = vpow.pop %v1516
        %v1518 = vadd.f32 %v1474, %v1511
        %v1519 = vadd.f32 %v1475, %v1513
        %v1520 = vadd.f32 %v1476, %v1515
        %v1521 = vadd.f32 %v1477, %v1517
        %v1522 = vsel %vm1486, %v1236, %v1478
        %v1523 = vsel %vm1487, %v1237, %v1479
        %v1524 = vsel %vm1488, %v1238, %v1480
        %v1525 = vsel %vm1489, %v1239, %v1481
        %v1526 = vsel %vm1486, %v1245, %v1482
        %v1527 = vsel %vm1487, %v1246, %v1483
        %v1528 = vsel %vm1488, %v1247, %v1484
        %v1529 = vsel %vm1489, %v1248, %v1485
        %vm1530 = vcmp.eq.s32.totalorder %v1159, 5
        %vm1531 = vcmp.eq.s32.totalorder %v1160, 5
        %vm1532 = vcmp.eq.s32.totalorder %v1161, 5
        %vm1533 = vcmp.eq.s32.totalorder %v1162, 5
        %v1534 = vsub.f32 %v1255, %v1297
        %v1535 = vsub.f32 %v1256, %v1298
        %v1536 = vsub.f32 %v1257, %v1299
        %v1537 = vsub.f32 %v1258, %v1300
        %v1538 = vmul.f32 %v1534, 1.442695
        %v1539 = vpow.pop %v1538
        %v1540 = vmul.f32 %v1535, 1.442695
        %v1541 = vpow.pop %v1540
        %v1542 = vmul.f32 %v1536, 1.442695
        %v1543 = vpow.pop %v1542
        %v1544 = vmul.f32 %v1537, 1.442695
        %v1545 = vpow.pop %v1544
        %v1546 = vadd.f32 %v1502, %v1539
        %v1547 = vadd.f32 %v1503, %v1541
        %v1548 = vadd.f32 %v1504, %v1543
        %v1549 = vadd.f32 %v1505, %v1545
        %v1550 = vsub.f32 %v1264, %v1306
        %v1551 = vsub.f32 %v1265, %v1307
        %v1552 = vsub.f32 %v1266, %v1308
        %v1553 = vsub.f32 %v1267, %v1309
        %v1554 = vmul.f32 %v1550, 1.442695
        %v1555 = vpow.pop %v1554
        %v1556 = vmul.f32 %v1551, 1.442695
        %v1557 = vpow.pop %v1556
        %v1558 = vmul.f32 %v1552, 1.442695
        %v1559 = vpow.pop %v1558
        %v1560 = vmul.f32 %v1553, 1.442695
        %v1561 = vpow.pop %v1560
        %v1562 = vadd.f32 %v1518, %v1555
        %v1563 = vadd.f32 %v1519, %v1557
        %v1564 = vadd.f32 %v1520, %v1559
        %v1565 = vadd.f32 %v1521, %v1561
        %v1566 = vsel %vm1530, %v1255, %v1522
        %v1567 = vsel %vm1531, %v1256, %v1523
        %v1568 = vsel %vm1532, %v1257, %v1524
        %v1569 = vsel %vm1533, %v1258, %v1525
        %v1570 = vsel %vm1530, %v1264, %v1526
        %v1571 = vsel %vm1531, %v1265, %v1527
        %v1572 = vsel %vm1532, %v1266, %v1528
        %v1573 = vsel %vm1533, %v1267, %v1529
        %vm1574 = vcmp.eq.s32.totalorder %v1159, 6
        %vm1575 = vcmp.eq.s32.totalorder %v1160, 6
        %vm1576 = vcmp.eq.s32.totalorder %v1161, 6
        %vm1577 = vcmp.eq.s32.totalorder %v1162, 6
        %v1578 = vsub.f32 %v1274, %v1297
        %v1579 = vsub.f32 %v1275, %v1298
        %v1580 = vsub.f32 %v1276, %v1299
        %v1581 = vsub.f32 %v1277, %v1300
        %v1582 = vmul.f32 %v1578, 1.442695
        %v1583 = vpow.pop %v1582
        %v1584 = vmul.f32 %v1579, 1.442695
        %v1585 = vpow.pop %v1584
        %v1586 = vmul.f32 %v1580, 1.442695
        %v1587 = vpow.pop %v1586
        %v1588 = vmul.f32 %v1581, 1.442695
        %v1589 = vpow.pop %v1588
        %v1590 = vadd.f32 %v1546, %v1583
        %v1591 = vadd.f32 %v1547, %v1585
        %v1592 = vadd.f32 %v1548, %v1587
        %v1593 = vadd.f32 %v1549, %v1589
        %v1594 = vsub.f32 %v1283, %v1306
        %v1595 = vsub.f32 %v1284, %v1307
        %v1596 = vsub.f32 %v1285, %v1308
        %v1597 = vsub.f32 %v1286, %v1309
        %v1598 = vmul.f32 %v1594, 1.442695
        %v1599 = vpow.pop %v1598
        %v1600 = vmul.f32 %v1595, 1.442695
        %v1601 = vpow.pop %v1600
        %v1602 = vmul.f32 %v1596, 1.442695
        %v1603 = vpow.pop %v1602
        %v1604 = vmul.f32 %v1597, 1.442695
        %v1605 = vpow.pop %v1604
        %v1606 = vadd.f32 %v1562, %v1599
        %v1607 = vadd.f32 %v1563, %v1601
        %v1608 = vadd.f32 %v1564, %v1603
        %v1609 = vadd.f32 %v1565, %v1605
        %v1610 = vsel %vm1574, %v1274, %v1566
        %v1611 = vsel %vm1575, %v1275, %v1567
        %v1612 = vsel %vm1576, %v1276, %v1568
        %v1613 = vsel %vm1577, %v1277, %v1569
        %v1614 = vsel %vm1574, %v1283, %v1570
        %v1615 = vsel %vm1575, %v1284, %v1571
        %v1616 = vsel %vm1576, %v1285, %v1572
        %v1617 = vsel %vm1577, %v1286, %v1573
        %vm1618 = vcmp.eq.s32.totalorder %v1159, 7
        %vm1619 = vcmp.eq.s32.totalorder %v1160, 7
        %vm1620 = vcmp.eq.s32.totalorder %v1161, 7
        %vm1621 = vcmp.eq.s32.totalorder %v1162, 7
        %v1622 = vsub.f32 %v1293, %v1297
        %v1623 = vsub.f32 %v1294, %v1298
        %v1624 = vsub.f32 %v1295, %v1299
        %v1625 = vsub.f32 %v1296, %v1300
        %v1626 = vmul.f32 %v1622, 1.442695
        %v1627 = vpow.pop %v1626
        %v1628 = vmul.f32 %v1623, 1.442695
        %v1629 = vpow.pop %v1628
        %v1630 = vmul.f32 %v1624, 1.442695
        %v1631 = vpow.pop %v1630
        %v1632 = vmul.f32 %v1625, 1.442695
        %v1633 = vpow.pop %v1632
        %v1634 = vadd.f32 %v1590, %v1627
        %v1635 = vadd.f32 %v1591, %v1629
        %v1636 = vadd.f32 %v1592, %v1631
        %v1637 = vadd.f32 %v1593, %v1633
        %v1638 = vsub.f32 %v1302, %v1306
        %v1639 = vsub.f32 %v1303, %v1307
        %v1640 = vsub.f32 %v1304, %v1308
        %v1641 = vsub.f32 %v1305, %v1309
        %v1642 = vmul.f32 %v1638, 1.442695
        %v1643 = vpow.pop %v1642
        %v1644 = vmul.f32 %v1639, 1.442695
        %v1645 = vpow.pop %v1644
        %v1646 = vmul.f32 %v1640, 1.442695
        %v1647 = vpow.pop %v1646
        %v1648 = vmul.f32 %v1641, 1.442695
        %v1649 = vpow.pop %v1648
        %v1650 = vadd.f32 %v1606, %v1643
        %v1651 = vadd.f32 %v1607, %v1645
        %v1652 = vadd.f32 %v1608, %v1647
        %v1653 = vadd.f32 %v1609, %v1649
        %v1654 = vsel %vm1618, %v1293, %v1610
        %v1655 = vsel %vm1619, %v1294, %v1611
        %v1656 = vsel %vm1620, %v1295, %v1612
        %v1657 = vsel %vm1621, %v1296, %v1613
        %v1658 = vsel %vm1618, %v1302, %v1614
        %v1659 = vsel %vm1619, %v1303, %v1615
        %v1660 = vsel %vm1620, %v1304, %v1616
        %v1661 = vsel %vm1621, %v1305, %v1617
        %v1662 = vlog2.pop %v1634
        %v1663 = vmul.f32 %v1662, 0.6931472
        %v1664 = vlog2.pop %v1635
        %v1665 = vmul.f32 %v1664, 0.6931472
        %v1666 = vlog2.pop %v1636
        %v1667 = vmul.f32 %v1666, 0.6931472
        %v1668 = vlog2.pop %v1637
        %v1669 = vmul.f32 %v1668, 0.6931472
        %v1670 = vadd.f32 %v1663, %v1297
        %v1671 = vadd.f32 %v1665, %v1298
        %v1672 = vadd.f32 %v1667, %v1299
        %v1673 = vadd.f32 %v1669, %v1300
        %v1674 = vsub.f32 %v1670, %v1654
        %v1675 = vsub.f32 %v1671, %v1655
        %v1676 = vsub.f32 %v1672, %v1656
        %v1677 = vsub.f32 %v1673, %v1657
        %v1678 = vsel %vm1163, 0.0, %v1674
        %v1679 = vsel %vm1164, 0.0, %v1675
        %v1680 = vsel %vm1165, 0.0, %v1676
        %v1681 = vsel %vm1166, 0.0, %v1677
        %v1682 = vlog2.pop %v1650
        %v1683 = vmul.f32 %v1682, 0.6931472
        %v1684 = vlog2.pop %v1651
        %v1685 = vmul.f32 %v1684, 0.6931472
        %v1686 = vlog2.pop %v1652
        %v1687 = vmul.f32 %v1686, 0.6931472
        %v1688 = vlog2.pop %v1653
        %v1689 = vmul.f32 %v1688, 0.6931472
        %v1690 = vadd.f32 %v1683, %v1306
        %v1691 = vadd.f32 %v1685, %v1307
        %v1692 = vadd.f32 %v1687, %v1308
        %v1693 = vadd.f32 %v1689, %v1309
        %v1694 = vsub.f32 %v1690, %v1658
        %v1695 = vsub.f32 %v1691, %v1659
        %v1696 = vsub.f32 %v1692, %v1660
        %v1697 = vsub.f32 %v1693, %v1661
        %v1698 = vsel %vm1163, 0.0, %v1694
        %v1699 = vsel %vm1164, 0.0, %v1695
        %v1700 = vsel %vm1165, 0.0, %v1696
        %v1701 = vsel %vm1166, 0.0, %v1697
        %v1702 = vmul.f32 %v1099, %v1678
        %v1703 = vmul.f32 %v1099, %v1679
        %v1704 = vmul.f32 %v1099, %v1680
        %v1705 = vmul.f32 %v1099, %v1681
        %v1706 = vadd.f32 %v1702, %v1104
        %v1707 = vadd.f32 %v1703, %v1104
        %v1708 = vadd.f32 %v1704, %v1104
        %v1709 = vadd.f32 %v1705, %v1104
        %s1710 = scalar_lea.vmem %s506, 32 [#allocation14]
        %1711 = vst [vmem:[%s1710] sm:$0xff] %v1706
        %1712 = vst [vmem:[%s1710 + $0x8] sm:$0xff] %v1707
        %1713 = vst [vmem:[%s1710 + $0x10] sm:$0xff] %v1708
        %1714 = vst [vmem:[%s1710 + $0x18] sm:$0xff] %v1709
        %v1715 = vmul.f32 %v1113, %v1698
        %v1716 = vmul.f32 %v1113, %v1699
        %v1717 = vmul.f32 %v1113, %v1700
        %v1718 = vmul.f32 %v1113, %v1701
        %v1719 = vadd.f32 %v1715, %v1118
        %v1720 = vadd.f32 %v1716, %v1118
        %v1721 = vadd.f32 %v1717, %v1118
        %v1722 = vadd.f32 %v1718, %v1118
        %s1723 = scalar_lea.vmem %s513, 32 [#allocation16]
        %1724 = vst [vmem:[%s1723] sm:$0xff] %v1719
        %1725 = vst [vmem:[%s1723 + $0x8] sm:$0xff] %v1720
        %1726 = vst [vmem:[%s1723 + $0x10] sm:$0xff] %v1721
        %1727 = vst [vmem:[%s1723 + $0x18] sm:$0xff] %v1722
        %s1728 = sand.u32 %s203, 1
        %s1729 = scalar_lea.sflag [#allocation6], %s1728
        %s1730 = sand.u32 %s203, 1
        %s1731 = smul.addr %s1730, 64
        %s1732 = scalar_lea.vmem [#allocation13], %s1731
        %s1733 = sand.u32 %s41, 1
        %s1734 = scalar_lea.sflag [#allocation15], %s1733
        %s1735 = sand.u32 %s231, 1
        %s1736 = smul.addr %s1735, 64
        %s1737 = scalar_lea.vmem [#allocation14], %s1736
        %s1738 = sand.u32 %s41, 1
        %s1739 = scalar_lea.sflag [#allocation15], %s1738
        %s1740 = sand.u32 %s259, 1
        %s1741 = smul.addr %s1740, 64
        %s1742 = scalar_lea.vmem [#allocation16], %s1741
        // Predicated region
        $region61: #{multitask_loss.1} parent=39 // pred_check
          %p1743 = pneg %p213
        $region62: #{multitask_loss.1} parent=39 // pred_check_branch
          %1745 = sbr.rel (%p1743) target = $region64
        $region63: #{multitask_loss.1} parent=39 // pred_region
          %s1746 = smul.u32 8, %s46
          %s1748 = ssub.s32 1024, 1024
          %1749 = vsyncadd %s1729, %s1748
          %s1750 = smul.addr %s45, 8
          %s1751 = sadd.s32 %s1746, %s1750
          %s1752 = smul.addr %s1751, 128
          %s1753 = scalar_lea.hbm %s6, %s1752
          %s1754 = sshll.u32 %s1732, 4
          %s1755 = int_to_ptr.vmem [resolvable:$true] %s1754
          %1760 = dma.vmem_to_hbm [thread:$0]  %s1755, 1024, %s1753, %s1729, 128, 128, 8
        $region64: #{multitask_loss.1} parent=39 // pred_fallthru
          _
        // Predicated region
        $region65: #{multitask_loss.1} parent=39 // pred_check
          %p1761 = pneg %p241
        $region66: #{multitask_loss.1} parent=39 // pred_check_branch
          %1763 = sbr.rel (%p1761) target = $region68
        $region67: #{multitask_loss.1} parent=39 // pred_region
          %s1764 = smul.u32 8, %s46
          %s1766 = ssub.s32 1024, 1024
          %1767 = vsyncadd %s1734, %s1766
          %s1768 = smul.addr %s45, 8
          %s1769 = sadd.s32 %s1764, %s1768
          %s1770 = smul.addr %s1769, 128
          %s1771 = scalar_lea.hbm %s7, %s1770
          %s1772 = sshll.u32 %s1737, 4
          %s1773 = int_to_ptr.vmem [resolvable:$true] %s1772
          %1778 = dma.vmem_to_hbm [thread:$0]  %s1773, 1024, %s1771, %s1734, 128, 128, 8
        $region68: #{multitask_loss.1} parent=39 // pred_fallthru
          _
        // Predicated region
        $region69: #{multitask_loss.1} parent=39 // pred_check
          %p1779 = pneg %p269
        $region70: #{multitask_loss.1} parent=39 // pred_check_branch
          %1781 = sbr.rel (%p1779) target = $region72
        $region71: #{multitask_loss.1} parent=39 // pred_region
          %s1782 = smul.u32 8, %s46
          %s1784 = ssub.s32 1024, 1024
          %1785 = vsyncadd %s1739, %s1784
          %s1786 = smul.addr %s45, 8
          %s1787 = sadd.s32 %s1782, %s1786
          %s1788 = smul.addr %s1787, 128
          %s1789 = scalar_lea.hbm %s8, %s1788
          %s1790 = sshll.u32 %s1742, 4
          %s1791 = int_to_ptr.vmem [resolvable:$true] %s1790
          %1796 = dma.vmem_to_hbm [thread:$0]  %s1791, 1024, %s1789, %s1739, 128, 128, 8
        $region72: #{multitask_loss.1} parent=39 // pred_fallthru
          _
      $region40: #{multitask_loss.1} parent=5 // pred_fallthru
        _
      %p1797 = scmp.le.s32.totalorder 2, %s36
      // Predicated region
      $region73: #{multitask_loss.1} parent=5 // pred_check
        %p1798 = pneg %p1797
      $region74: #{multitask_loss.1} parent=5 // pred_check_branch
        %1800 = sbr.rel (%p1798) target = $region76
      $region75: #{multitask_loss.1} parent=5 // pred_region
        %s1801 = ssub.s32 %s36, 2
        // Predicated region
        $region77: #{multitask_loss.1} parent=75 // pred_check
          %p1802 = pneg %p219
        $region78: #{multitask_loss.1} parent=75 // pred_check_branch
          %1804 = sbr.rel (%p1802) target = $region80
        $region79: #{multitask_loss.1} parent=75 // pred_region
          %s1805 = sand.u32 %s204, 1
          %s1806 = scalar_lea.sflag [#allocation6], %s1805
          %s1807 = sand.u32 %s204, 1
          %s1808 = smul.addr %s1807, 64
          %s1809 = scalar_lea.vmem [#allocation13], %s1808
          %1810 = dma.done %s1806, 1024
        $region80: #{multitask_loss.1} parent=75 // pred_fallthru
          _
        // Predicated region
        $region81: #{multitask_loss.1} parent=75 // pred_check
          %p1811 = pneg %p247
        $region82: #{multitask_loss.1} parent=75 // pred_check_branch
          %1813 = sbr.rel (%p1811) target = $region84
        $region83: #{multitask_loss.1} parent=75 // pred_region
          %s1814 = sand.u32 %s42, 1
          %s1815 = scalar_lea.sflag [#allocation15], %s1814
          %s1816 = sand.u32 %s232, 1
          %s1817 = smul.addr %s1816, 64
          %s1818 = scalar_lea.vmem [#allocation14], %s1817
          %1819 = dma.done %s1815, 1024
        $region84: #{multitask_loss.1} parent=75 // pred_fallthru
          _
        // Predicated region
        $region85: #{multitask_loss.1} parent=75 // pred_check
          %p1820 = pneg %p275
        $region86: #{multitask_loss.1} parent=75 // pred_check_branch
          %1822 = sbr.rel (%p1820) target = $region88
        $region87: #{multitask_loss.1} parent=75 // pred_region
          %s1823 = sand.u32 %s42, 1
          %s1824 = scalar_lea.sflag [#allocation15], %s1823
          %s1825 = sand.u32 %s260, 1
          %s1826 = smul.addr %s1825, 64
          %s1827 = scalar_lea.vmem [#allocation16], %s1826
          %1828 = dma.done %s1824, 1024
        $region88: #{multitask_loss.1} parent=75 // pred_fallthru
          _
      $region76: #{multitask_loss.1} parent=5 // pred_fallthru
        _
    $region6: #{multitask_loss.1} parent=1 // loop_footer
      %s40 = sadd.s32 1, %s36
    $region7: #{multitask_loss.1} parent=1 // loop_footer_branch
      %35 = sbr.rel target = $region3
    $region8: #{multitask_loss.1} parent=1 // loop_exit
      _
    %1829 = vsyncpa [#allocation5], 1
    %s1830 = scalar_lea.sflag [#allocation5], 1
    %1831 = vsyncpa %s1830, 1
    %1832 = vsyncpa [#allocation8], 1
    %s1833 = scalar_lea.sflag [#allocation8], 1
    %1834 = vsyncpa %s1833, 1
    %1835 = vsyncpa [#allocation11], 1
    %s1836 = scalar_lea.sflag [#allocation11], 1
    %1837 = vsyncpa %s1836, 1
    %1838 = vsyncpa [#allocation6], 1
    %s1839 = scalar_lea.sflag [#allocation6], 1
    %1840 = vsyncpa %s1839, 1
    %1841 = vsyncpa [#allocation15], 1
    %s1842 = scalar_lea.sflag [#allocation15], 1
    %1843 = vsyncpa %s1842, 1

</llo_original>
